<compile_context>
chip_gen: v7x
topology: tpu7x:2x2x1
jax: 0.10.0
libtpu: 0.0.40
codegen_flags: <defaults>
</compile_context>

<pallas_src>
import functools

import jax
import jax.numpy as jnp
from jax.experimental import pallas as pl
from jax.experimental.pallas import tpu as pltpu


_MAX_CLOUDS_PER_STEP = 16  # static-unroll bound when packing small clouds per step


# ---------------------------------------------------------------------------
# Kernel
# ---------------------------------------------------------------------------
def _global_sa_kernel(x_ref, pos_ref, w1x_ref, w1p_ref, b1_ref, w2f_ref,
                      b2f_ref, ss2_ref, o_ref, *, num_clouds, tile_pts,
                      tiles_per_core, valid_pts, mask_tail):
    """Fused per-point MLP + global max pool over a (num_clouds, tile_pts) slab."""
    t = pl.program_id(2)

    @pl.when(t == 0)
    def _init():
        o_ref[...] = jnp.full(o_ref.shape, -jnp.inf, o_ref.dtype)

    w1x = w1x_ref[...]            # (F, H)  bf16
    w1p = w1p_ref[...]            # (D, H)  bf16
    b1 = b1_ref[...]              # (1, H)  f32
    w2f = w2f_ref[...]            # (H, 1)  f32   (BN1 folded in)
    b2f = b2f_ref[...]            # (1, 1)  f32   (BN1 folded in)
    s2 = ss2_ref[0:1, :]          # (1, 1)  BN2 scale
    t2 = ss2_ref[1:2, :]          # (1, 1)  BN2 shift

    if mask_tail:
        c = pl.program_id(0)
        row0 = (c * tiles_per_core + t) * tile_pts
        rows = row0 + jax.lax.broadcasted_iota(jnp.int32, (tile_pts, 1), 0)
        valid = rows < valid_pts                       # (tile_pts, 1) bool

    for g in range(num_clouds):   # static unroll; num_clouds <= _MAX_CLOUDS_PER_STEP
        xg = x_ref[g].astype(jnp.bfloat16)             # (tile_pts, F)
        pg = pos_ref[g].astype(jnp.bfloat16)           # (tile_pts, D)

        # Layer 1 on the MXU (bf16 operands, f32 accumulation). The x/pos split
        # keeps ingestion concat-free; K=F and K=D both ride the MXU slack.
        h = (jnp.dot(xg, w1x, preferred_element_type=jnp.float32)
             + jnp.dot(pg, w1p, preferred_element_type=jnp.float32)
             + b1)
        h = jnp.maximum(h, 0.0)

        # Layer 2 (C_out == 1) also on the MXU; BN1 already folded into w2f/b2f.
        z = jnp.dot(h, w2f, preferred_element_type=jnp.float32) + b2f  # (tile_pts, 1)

        if mask_tail:
            z_hi = jnp.where(valid, z, -jnp.inf)
            z_lo = jnp.where(valid, z, jnp.inf)
        else:
            z_hi = z
            z_lo = z

        # Pool z first, then apply the monotone ReLU/BN2 map to the two extrema
        # (exact for either sign of the BN2 scale) — removes three per-point
        # passes over the 1-lane (tile_pts, 1) intermediate.
        z_max = jnp.max(z_hi, axis=0, keepdims=True)   # (1, 1)
        z_min = jnp.min(z_lo, axis=0, keepdims=True)   # (1, 1)
        cand_hi = jnp.maximum(z_max, 0.0) * s2 + t2
        cand_lo = jnp.maximum(z_min, 0.0) * s2 + t2
        y_g = jnp.maximum(cand_hi, cand_lo)            # (1, 1)

        o_ref[0, g] = jnp.maximum(o_ref[0, g], y_g)


# ---------------------------------------------------------------------------
# Parameter preparation (BN fusion + bf16 weights, x/pos weight split)
# ---------------------------------------------------------------------------
def prepare_kernel_params(raw_params, num_x_features, eps=1e-5):
    w1, b1, (g1, be1, m1, v1), w2, b2, (g2, be2, m2, v2) = raw_params
    assert w2.shape[1] == 1, "layer-2 path assumes a single output channel"

    s1 = g1 / jnp.sqrt(v1 + eps)
    t1 = be1 - m1 * s1
    s2 = g2 / jnp.sqrt(v2 + eps)
    t2 = be2 - m2 * s2

    # Fold BN1 (applied after ReLU, before Linear2) into Linear2 — exact:
    #   (s1*h + t1) @ w2 + b2 == h @ (s1[:,None]*w2) + (t1 @ w2 + b2)
    w2f = (s1[:, None] * w2).astype(jnp.float32)                   # (H, 1)
    b2f = jnp.reshape(b2 + t1 @ w2, (1, 1)).astype(jnp.float32)    # (1, 1)
    ss2 = jnp.stack([s2, t2], axis=0).astype(jnp.float32)          # (2, 1)

    F = int(num_x_features)
    w1x = w1[:F].astype(jnp.bfloat16)                              # (F, H)
    w1p = w1[F:].astype(jnp.bfloat16)                              # (D, H)
    b1 = jnp.reshape(b1, (1, -1)).astype(jnp.float32)              # (1, H)
    return w1x, w1p, b1, w2f, b2f, ss2


# ---------------------------------------------------------------------------
# Wrapper: GlobalSAModule.forward
# ---------------------------------------------------------------------------
def _round_up(a, b):
    return (a + b - 1) // b * b


def global_sa_forward(x, pos, batch_vec, num_graphs, raw_params, *,
                      tile_n=8192, validate_batch=False):
    """GlobalSAModule forward.

    x: (N, F) f32, pos: (N, 3) f32, batch_vec: (N,) int.
    Contract: batch_vec must hold sorted, equal-sized per-cloud segments,
    i.e. batch_vec == repeat(arange(B), N // B).
    Returns (pooled (B, 1) f32, zeros (B, 3), arange (B,)).
    """
    # TODO(synk): arbitrary/unsorted `batch` vectors (ragged clouds) would need a
    # scatter/segment-max path; this kernel assumes sorted, equal-sized segments.
    N, F = x.shape
    D = pos.shape[1]
    B = int(num_graphs)
    assert N % B == 0, "equal-sized, sorted per-cloud segments required"
    P = N // B
    if validate_batch:
        expected = jnp.repeat(jnp.arange(B, dtype=batch_vec.dtype), P)
        assert bool(jnp.all(batch_vec == expected)), \
            "batch_vec must be sorted, equal-sized segments"

    w1x, w1p, b1, w2f, b2f, ss2 = prepare_kernel_params(raw_params, F)
    H = w1x.shape[1]
    assert w1x.shape[0] == F and w1p.shape[0] == D

    # Zero-copy per-cloud views; no concat / cast / pad pass through HBM.
    x3 = x.reshape(B, P, F)
    pos3 = pos.reshape(B, P, D)

    # Point-tile size: multiple of 8 sublanes, big enough to amortize the
    # ~0.35us per-grid-step overhead, clamped to the (8-padded) cloud size.
    tile_n = max(8, int(tile_n))
    tn = max(8, min((tile_n // 8) * 8, _round_up(P, 8)))
    T = -(-P // tn)                      # point tiles per cloud
    mask_tail = (T * tn != P)            # in-kernel tail mask instead of HBM pad

    # Pack several small clouds per grid step to amortize step overhead.
    g_cap = min(B, _MAX_CLOUDS_PER_STEP, max(1, tile_n // tn))
    G = 1
    for g in range(g_cap, 0, -1):
        if B % g == 0:
            G = g
            break
    BG = B // G

    # If the batch axis offers no megacore parallelism (v7x: 2 TensorCores),
    # split the point-tile reduction across a leading parallel axis and
    # combine the per-core partial maxima in the wrapper.
    C = 2 if (BG == 1 and T >= 2 and T % 2 == 0) else 1
    T2 = T // C

    kernel = functools.partial(
        _global_sa_kernel, num_clouds=G, tile_pts=tn, tiles_per_core=T2,
        valid_pts=P, mask_tail=mask_tail)

    out = pl.pallas_call(
        kernel,
        out_shape=jax.ShapeDtypeStruct((C, B, 1, 1), jnp.float32),
        grid_spec=pltpu.PrefetchScalarGridSpec(
            num_scalar_prefetch=0,
            grid=(C, BG, T2),
            in_specs=[
                pl.BlockSpec((G, tn, F), lambda c, b, t: (b, c * T2 + t, 0)),  # x slab
                pl.BlockSpec((G, tn, D), lambda c, b, t: (b, c * T2 + t, 0)),  # pos slab
                pl.BlockSpec((F, H), lambda c, b, t: (0, 0)),   # w1[:F]  (bf16, resident)
                pl.BlockSpec((D, H), lambda c, b, t: (0, 0)),   # w1[F:]  (bf16, resident)
                pl.BlockSpec((1, H), lambda c, b, t: (0, 0)),   # b1
                pl.BlockSpec((H, 1), lambda c, b, t: (0, 0)),   # w2 (BN1 folded)
                pl.BlockSpec((1, 1), lambda c, b, t: (0, 0)),   # b2 (BN1 folded)
                pl.BlockSpec((2, 1), lambda c, b, t: (0, 0)),   # BN2 scale/shift
            ],
            out_specs=pl.BlockSpec((1, G, 1, 1), lambda c, b, t: (c, b, 0, 0)),
        ),
        compiler_params=pltpu.CompilerParams(
            dimension_semantics=("parallel", "parallel", "arbitrary")),
    )(x3, pos3, w1x, w1p, b1, w2f, b2f, ss2)

    x_out = jnp.max(out, axis=0).reshape(B, 1)   # combine per-core partial maxima
    pos_out = jnp.zeros((B, D), pos.dtype)
    batch_out = jnp.arange(B, dtype=batch_vec.dtype)
    return x_out, pos_out, batch_out


# ---------------------------------------------------------------------------
# Synthetic parameters + pure-JAX reference
# ---------------------------------------------------------------------------
def init_params(key, in_channels, hidden=128, out=1):
    """Raw MLP([in_channels, hidden, out]) parameters (Lin,ReLU,BN,Lin,ReLU,BN)."""
    ks = jax.random.split(key, 10)
    lim1 = 1.0 / jnp.sqrt(in_channels)
    w1 = jax.random.uniform(ks[0], (in_channels, hidden), jnp.float32, -lim1, lim1)
    b1 = jax.random.uniform(ks[1], (1, hidden), jnp.float32, -lim1, lim1)
    g1 = 1.0 + 0.1 * jax.random.normal(ks[2], (hidden,), jnp.float32)
    be1 = 0.1 * jax.random.normal(ks[3], (hidden,), jnp.float32)
    m1 = 0.05 * jax.random.normal(ks[4], (hidden,), jnp.float32)
    v1 = 1.0 + 0.1 * jnp.abs(jax.random.normal(ks[5], (hidden,), jnp.float32))

    lim2 = 1.0 / jnp.sqrt(hidden)
    w2 = jax.random.uniform(ks[6], (hidden, out), jnp.float32, -lim2, lim2)
    b2 = jax.random.uniform(ks[7], (1, out), jnp.float32, -lim2, lim2)
    g2 = 1.0 + 0.1 * jax.random.normal(ks[8], (out,), jnp.float32)
    be2 = 0.1 * jax.random.normal(ks[9], (out,), jnp.float32)
    m2 = jnp.zeros((out,), jnp.float32)
    v2 = jnp.ones((out,), jnp.float32)

    return (w1, b1, (g1, be1, m1, v1), w2, b2, (g2, be2, m2, v2))


def _ref_forward(x, pos, batch_vec, num_graphs, raw_params, eps=1e-5):
    """f32 pure-JAX reference with GlobalSAModule semantics."""
    w1, b1, (g1, be1, m1, v1), w2, b2, (g2, be2, m2, v2) = raw_params
    xin = jnp.concatenate([x, pos], axis=1)
    h = jnp.maximum(xin @ w1 + b1, 0.0)
    s1 = g1 / jnp.sqrt(v1 + eps)
    t1 = be1 - m1 * s1
    h = h * s1 + t1
    y = jnp.maximum(h @ w2 + b2, 0.0)
    s2 = g2 / jnp.sqrt(v2 + eps)
    t2 = be2 - m2 * s2
    y = y * s2 + t2
    pooled = jax.ops.segment_max(y, batch_vec, num_segments=num_graphs)
    return (pooled,
            jnp.zeros((num_graphs, pos.shape[1]), pos.dtype),
            jnp.arange(num_graphs, dtype=batch_vec.dtype))


if __name__ == "__main__":
    key = jax.random.PRNGKey(0)
    kx, kpos, kp = jax.random.split(key, 3)

    # Small shapes: 2 point clouds, 200 points each, 61 features (+3 pos -> 64 in).
    B, P, F, H = 2, 200, 61, 128
    N = B * P
    x = jax.random.normal(kx, (N, F), jnp.float32)
    pos = jax.random.normal(kpos, (N, 3), jnp.float32)
    batch = jnp.repeat(jnp.arange(B, dtype=jnp.int32), P)

    raw_params = init_params(kp, in_channels=F + 3, hidden=H, out=1)

    ref_x, ref_pos, ref_batch = _ref_forward(x, pos, batch, B, raw_params)

    # (a) default tiling: both clouds packed into a single grid step.
    x_out, pos_out, batch_out = global_sa_forward(x, pos, batch, B, raw_params,
                                                  validate_batch=True)
    x_out = jax.block_until_ready(x_out)

    assert x_out.shape == (B, 1)
    assert pos_out.shape == (B, 3)
    assert batch_out.shape == (B,)
    # bf16 layer-1 matmul -> modest tolerance against the f32 reference.
    assert jnp.allclose(x_out, ref_x, atol=5e-2, rtol=5e-2), "mismatch vs JAX reference"
    assert jnp.array_equal(pos_out, ref_pos)
    assert jnp.array_equal(batch_out, ref_batch)

    # (b) small point tiles: exercises the multi-tile max accumulator and the
    # in-kernel tail mask (200 points with tile_n=64 -> 4 tiles, ragged last tile).
    x_out_b, _, _ = global_sa_forward(x, pos, batch, B, raw_params, tile_n=64)
    x_out_b = jax.block_until_ready(x_out_b)
    assert jnp.allclose(x_out_b, ref_x, atol=5e-2, rtol=5e-2), "tiled-path mismatch"

    print("KERNEL_OK")
</pallas_src>

<mosaic_0001>
module attributes {stable_mosaic.version = 11 : i64} {
  func.func @_global_sa_kernel(%arg0: i32, %arg1: i32, %arg2: i32, %arg3: memref<2x200x61xf32, #tpu.memory_space<vmem>>, %arg4: memref<2x200x3xf32, #tpu.memory_space<vmem>>, %arg5: memref<61x128xbf16, #tpu.memory_space<vmem>>, %arg6: memref<3x128xbf16, #tpu.memory_space<vmem>>, %arg7: memref<1x128xf32, #tpu.memory_space<vmem>>, %arg8: memref<128x1xf32, #tpu.memory_space<vmem>>, %arg9: memref<1x1xf32, #tpu.memory_space<vmem>>, %arg10: memref<2x1xf32, #tpu.memory_space<vmem>>, %arg11: memref<1x2x1x1xf32, #tpu.memory_space<vmem>>) attributes {dimension_semantics = [#tpu.dimension_semantics<parallel>, #tpu.dimension_semantics<parallel>, #tpu.dimension_semantics<arbitrary>], iteration_bounds = array<i64: 1, 1, 1>, scalar_prefetch = 0 : i64, scratch_operands = 0 : i64, tpu.core_type = #tpu.core_type<tc>, window_params = [{transform_indices = @transform_0, window_bounds = array<i64: 2, 200, 61>}, {transform_indices = @transform_1, window_bounds = array<i64: 2, 200, 3>}, {pipeline_mode = #tpu.pipeline_mode<synchronous>, transform_indices = @transform_2, window_bounds = array<i64: 61, 128>}, {pipeline_mode = #tpu.pipeline_mode<synchronous>, transform_indices = @transform_3, window_bounds = array<i64: 3, 128>}, {pipeline_mode = #tpu.pipeline_mode<synchronous>, transform_indices = @transform_4, window_bounds = array<i64: 1, 128>}, {pipeline_mode = #tpu.pipeline_mode<synchronous>, transform_indices = @transform_5, window_bounds = array<i64: 128, 1>}, {pipeline_mode = #tpu.pipeline_mode<synchronous>, transform_indices = @transform_6, window_bounds = array<i64: 1, 1>}, {pipeline_mode = #tpu.pipeline_mode<synchronous>, transform_indices = @transform_7, window_bounds = array<i64: 2, 1>}, {transform_indices = @transform_8, window_bounds = array<i64: 1, 2, 1, 1>}]} {
    %c0_i32 = arith.constant 0 : i32
    %0 = arith.cmpi eq, %arg2, %c0_i32 : i32
    %1 = arith.extui %0 : i1 to i32
    %c0_i32_0 = arith.constant 0 : i32
    %2 = arith.cmpi ne, %1, %c0_i32_0 : i32
    scf.if %2 {
      %cst_56 = arith.constant 0xFF800000 : f32
      %80 = vector.broadcast %cst_56 : f32 to vector<1x2x1x1xf32>
      %c0_57 = arith.constant 0 : index
      %c0_58 = arith.constant 0 : index
      %c0_59 = arith.constant 0 : index
      %c0_60 = arith.constant 0 : index
      %81 = vector.load %arg11[%c0_57, %c0_58, %c0_59, %c0_60] : memref<1x2x1x1xf32, #tpu.memory_space<vmem>>, vector<1x2x1x1xf32>
      tpu.vector_store %arg11[%c0_57, %c0_58, %c0_59, %c0_60], %80 {strides = array<i32>} : memref<1x2x1x1xf32, #tpu.memory_space<vmem>>, vector<1x2x1x1xf32>,
    } else {
    }
    %c0 = arith.constant 0 : index
    %c0_1 = arith.constant 0 : index
    %3 = vector.load %arg5[%c0, %c0_1] : memref<61x128xbf16, #tpu.memory_space<vmem>>, vector<61x128xbf16>
    %c0_2 = arith.constant 0 : index
    %c0_3 = arith.constant 0 : index
    %4 = vector.load %arg6[%c0_2, %c0_3] : memref<3x128xbf16, #tpu.memory_space<vmem>>, vector<3x128xbf16>
    %c0_4 = arith.constant 0 : index
    %c0_5 = arith.constant 0 : index
    %5 = vector.load %arg7[%c0_4, %c0_5] : memref<1x128xf32, #tpu.memory_space<vmem>>, vector<1x128xf32>
    %c0_6 = arith.constant 0 : index
    %c0_7 = arith.constant 0 : index
    %6 = vector.load %arg8[%c0_6, %c0_7] : memref<128x1xf32, #tpu.memory_space<vmem>>, vector<128x1xf32>
    %c0_8 = arith.constant 0 : index
    %c0_9 = arith.constant 0 : index
    %7 = vector.load %arg9[%c0_8, %c0_9] : memref<1x1xf32, #tpu.memory_space<vmem>>, vector<1x1xf32>
    %c0_10 = arith.constant 0 : index
    %c0_11 = arith.constant 0 : index
    %8 = vector.load %arg10[%c0_10, %c0_11] : memref<2x1xf32, #tpu.memory_space<vmem>>, vector<1x1xf32>
    %c1 = arith.constant 1 : index
    %c0_12 = arith.constant 0 : index
    %9 = vector.load %arg10[%c1, %c0_12] : memref<2x1xf32, #tpu.memory_space<vmem>>, vector<1x1xf32>
    %c0_13 = arith.constant 0 : index
    %c0_14 = arith.constant 0 : index
    %c0_15 = arith.constant 0 : index
    %10 = vector.load %arg3[%c0_13, %c0_14, %c0_15] : memref<2x200x61xf32, #tpu.memory_space<vmem>>, vector<1x200x61xf32>
    %11 = vector.shape_cast %10 : vector<1x200x61xf32> to vector<200x61xf32>
    %12 = arith.truncf %11 : vector<200x61xf32> to vector<200x61xbf16>
    %c0_16 = arith.constant 0 : index
    %c0_17 = arith.constant 0 : index
    %c0_18 = arith.constant 0 : index
    %13 = vector.load %arg4[%c0_16, %c0_17, %c0_18] : memref<2x200x3xf32, #tpu.memory_space<vmem>>, vector<1x200x3xf32>
    %14 = vector.shape_cast %13 : vector<1x200x3xf32> to vector<200x3xf32>
    %15 = arith.truncf %14 : vector<200x3xf32> to vector<200x3xbf16>
    %cst = arith.constant dense<0.000000e+00> : vector<200x128xf32>
    %16 = tpu.matmul %12, %3, %cst {dimension_numbers = #tpu.dot_dimension_numbers<[1], [0], [0], [1], [0, 0, 1, 1], [], []>} : vector<200x61xbf16>, vector<61x128xbf16>, vector<200x128xf32> -> vector<200x128xf32>
    %cst_19 = arith.constant dense<0.000000e+00> : vector<200x128xf32>
    %17 = tpu.matmul %15, %4, %cst_19 {dimension_numbers = #tpu.dot_dimension_numbers<[1], [0], [0], [1], [0, 0, 1, 1], [], []>} : vector<200x3xbf16>, vector<3x128xbf16>, vector<200x128xf32> -> vector<200x128xf32>
    %18 = arith.addf %16, %17 : vector<200x128xf32>
    %19 = vector.broadcast %5 : vector<1x128xf32> to vector<200x128xf32>
    %20 = arith.addf %18, %19 : vector<200x128xf32>
    %cst_20 = arith.constant 0.000000e+00 : f32
    %21 = vector.broadcast %cst_20 : f32 to vector<200x128xf32>
    %22 = arith.maximumf %20, %21 : vector<200x128xf32>
    %cst_21 = arith.constant dense<0.000000e+00> : vector<200x1xf32>
    %23 = tpu.matmul %22, %6, %cst_21 {dimension_numbers = #tpu.dot_dimension_numbers<[1], [0], [0], [1], [0, 0, 1, 1], [], []>} : vector<200x128xf32>, vector<128x1xf32>, vector<200x1xf32> -> vector<200x1xf32>
    %24 = vector.broadcast %7 : vector<1x1xf32> to vector<200x1xf32>
    %25 = arith.addf %23, %24 : vector<200x1xf32>
    %cst_22 = arith.constant dense<0xFF800000> : vector<1xf32>
    %26 = vector.multi_reduction <maximumf>, %25, %cst_22 [0] : vector<200x1xf32> to vector<1xf32>
    %27 = vector.shape_cast %26 : vector<1xf32> to vector<1x1xf32>
    %cst_23 = arith.constant dense<0x7F800000> : vector<1xf32>
    %28 = vector.multi_reduction <minimumf>, %25, %cst_23 [0] : vector<200x1xf32> to vector<1xf32>
    %29 = vector.shape_cast %28 : vector<1xf32> to vector<1x1xf32>
    %cst_24 = arith.constant 0.000000e+00 : f32
    %30 = vector.broadcast %cst_24 : f32 to vector<1x1xf32>
    %31 = arith.maximumf %27, %30 : vector<1x1xf32>
    %32 = arith.mulf %31, %8 : vector<1x1xf32>
    %33 = arith.addf %32, %9 : vector<1x1xf32>
    %cst_25 = arith.constant 0.000000e+00 : f32
    %34 = vector.broadcast %cst_25 : f32 to vector<1x1xf32>
    %35 = arith.maximumf %29, %34 : vector<1x1xf32>
    %36 = arith.mulf %35, %8 : vector<1x1xf32>
    %37 = arith.addf %36, %9 : vector<1x1xf32>
    %38 = arith.maximumf %33, %37 : vector<1x1xf32>
    %c0_26 = arith.constant 0 : index
    %c0_27 = arith.constant 0 : index
    %c0_28 = arith.constant 0 : index
    %c0_29 = arith.constant 0 : index
    %39 = vector.load %arg11[%c0_26, %c0_27, %c0_28, %c0_29] : memref<1x2x1x1xf32, #tpu.memory_space<vmem>>, vector<1x1x1x1xf32>
    %40 = vector.shape_cast %39 : vector<1x1x1x1xf32> to vector<1x1xf32>
    %41 = arith.maximumf %40, %38 : vector<1x1xf32>
    %c0_30 = arith.constant 0 : index
    %c0_31 = arith.constant 0 : index
    %c0_32 = arith.constant 0 : index
    %c0_33 = arith.constant 0 : index
    %42 = vector.load %arg11[%c0_30, %c0_31, %c0_32, %c0_33] : memref<1x2x1x1xf32, #tpu.memory_space<vmem>>, vector<1x1x1x1xf32>
    %43 = vector.shape_cast %42 : vector<1x1x1x1xf32> to vector<1x1xf32>
    %44 = vector.shape_cast %41 : vector<1x1xf32> to vector<1x1x1x1xf32>
    tpu.vector_store %arg11[%c0_30, %c0_31, %c0_32, %c0_33], %44 {strides = array<i32>} : memref<1x2x1x1xf32, #tpu.memory_space<vmem>>, vector<1x1x1x1xf32>,
    %c1_34 = arith.constant 1 : index
    %c0_35 = arith.constant 0 : index
    %c0_36 = arith.constant 0 : index
    %45 = vector.load %arg3[%c1_34, %c0_35, %c0_36] : memref<2x200x61xf32, #tpu.memory_space<vmem>>, vector<1x200x61xf32>
    %46 = vector.shape_cast %45 : vector<1x200x61xf32> to vector<200x61xf32>
    %47 = arith.truncf %46 : vector<200x61xf32> to vector<200x61xbf16>
    %c1_37 = arith.constant 1 : index
    %c0_38 = arith.constant 0 : index
    %c0_39 = arith.constant 0 : index
    %48 = vector.load %arg4[%c1_37, %c0_38, %c0_39] : memref<2x200x3xf32, #tpu.memory_space<vmem>>, vector<1x200x3xf32>
    %49 = vector.shape_cast %48 : vector<1x200x3xf32> to vector<200x3xf32>
    %50 = arith.truncf %49 : vector<200x3xf32> to vector<200x3xbf16>
    %cst_40 = arith.constant dense<0.000000e+00> : vector<200x128xf32>
    %51 = tpu.matmul %47, %3, %cst_40 {dimension_numbers = #tpu.dot_dimension_numbers<[1], [0], [0], [1], [0, 0, 1, 1], [], []>} : vector<200x61xbf16>, vector<61x128xbf16>, vector<200x128xf32> -> vector<200x128xf32>
    %cst_41 = arith.constant dense<0.000000e+00> : vector<200x128xf32>
    %52 = tpu.matmul %50, %4, %cst_41 {dimension_numbers = #tpu.dot_dimension_numbers<[1], [0], [0], [1], [0, 0, 1, 1], [], []>} : vector<200x3xbf16>, vector<3x128xbf16>, vector<200x128xf32> -> vector<200x128xf32>
    %53 = arith.addf %51, %52 : vector<200x128xf32>
    %54 = vector.broadcast %5 : vector<1x128xf32> to vector<200x128xf32>
    %55 = arith.addf %53, %54 : vector<200x128xf32>
    %cst_42 = arith.constant 0.000000e+00 : f32
    %56 = vector.broadcast %cst_42 : f32 to vector<200x128xf32>
    %57 = arith.maximumf %55, %56 : vector<200x128xf32>
    %cst_43 = arith.constant dense<0.000000e+00> : vector<200x1xf32>
    %58 = tpu.matmul %57, %6, %cst_43 {dimension_numbers = #tpu.dot_dimension_numbers<[1], [0], [0], [1], [0, 0, 1, 1], [], []>} : vector<200x128xf32>, vector<128x1xf32>, vector<200x1xf32> -> vector<200x1xf32>
    %59 = vector.broadcast %7 : vector<1x1xf32> to vector<200x1xf32>
    %60 = arith.addf %58, %59 : vector<200x1xf32>
    %cst_44 = arith.constant dense<0xFF800000> : vector<1xf32>
    %61 = vector.multi_reduction <maximumf>, %60, %cst_44 [0] : vector<200x1xf32> to vector<1xf32>
    %62 = vector.shape_cast %61 : vector<1xf32> to vector<1x1xf32>
    %cst_45 = arith.constant dense<0x7F800000> : vector<1xf32>
    %63 = vector.multi_reduction <minimumf>, %60, %cst_45 [0] : vector<200x1xf32> to vector<1xf32>
    %64 = vector.shape_cast %63 : vector<1xf32> to vector<1x1xf32>
    %cst_46 = arith.constant 0.000000e+00 : f32
    %65 = vector.broadcast %cst_46 : f32 to vector<1x1xf32>
    %66 = arith.maximumf %62, %65 : vector<1x1xf32>
    %67 = arith.mulf %66, %8 : vector<1x1xf32>
    %68 = arith.addf %67, %9 : vector<1x1xf32>
    %cst_47 = arith.constant 0.000000e+00 : f32
    %69 = vector.broadcast %cst_47 : f32 to vector<1x1xf32>
    %70 = arith.maximumf %64, %69 : vector<1x1xf32>
    %71 = arith.mulf %70, %8 : vector<1x1xf32>
    %72 = arith.addf %71, %9 : vector<1x1xf32>
    %73 = arith.maximumf %68, %72 : vector<1x1xf32>
    %c0_48 = arith.constant 0 : index
    %c1_49 = arith.constant 1 : index
    %c0_50 = arith.constant 0 : index
    %c0_51 = arith.constant 0 : index
    %74 = vector.load %arg11[%c0_48, %c1_49, %c0_50, %c0_51] : memref<1x2x1x1xf32, #tpu.memory_space<vmem>>, vector<1x1x1x1xf32>
    %75 = vector.shape_cast %74 : vector<1x1x1x1xf32> to vector<1x1xf32>
    %76 = arith.maximumf %75, %73 : vector<1x1xf32>
    %c0_52 = arith.constant 0 : index
    %c1_53 = arith.constant 1 : index
    %c0_54 = arith.constant 0 : index
    %c0_55 = arith.constant 0 : index
    %77 = vector.load %arg11[%c0_52, %c1_53, %c0_54, %c0_55] : memref<1x2x1x1xf32, #tpu.memory_space<vmem>>, vector<1x1x1x1xf32>
    %78 = vector.shape_cast %77 : vector<1x1x1x1xf32> to vector<1x1xf32>
    %79 = vector.shape_cast %76 : vector<1x1xf32> to vector<1x1x1x1xf32>
    tpu.vector_store %arg11[%c0_52, %c1_53, %c0_54, %c0_55], %79 {strides = array<i32>} : memref<1x2x1x1xf32, #tpu.memory_space<vmem>>, vector<1x1x1x1xf32>,
    return
  }
  func.func @transform_0(%arg0: i32, %arg1: i32, %arg2: i32) -> (i32, i32, i32) {
    %c1_i32 = arith.constant 1 : i32
    %0 = arith.muli %arg0, %c1_i32 : i32
    %1 = arith.addi %0, %arg2 : i32
    %c0_i32 = arith.constant 0 : i32
    %c0_i32_0 = arith.constant 0 : i32
    return %arg1, %1, %c0_i32 : i32, i32, i32
  }
  func.func @transform_1(%arg0: i32, %arg1: i32, %arg2: i32) -> (i32, i32, i32) {
    %c1_i32 = arith.constant 1 : i32
    %0 = arith.muli %arg0, %c1_i32 : i32
    %1 = arith.addi %0, %arg2 : i32
    %c0_i32 = arith.constant 0 : i32
    %c0_i32_0 = arith.constant 0 : i32
    return %arg1, %1, %c0_i32 : i32, i32, i32
  }
  func.func @transform_2(%arg0: i32, %arg1: i32, %arg2: i32) -> (i32, i32) {
    %c0_i32 = arith.constant 0 : i32
    %c0_i32_0 = arith.constant 0 : i32
    %c0_i32_1 = arith.constant 0 : i32
    return %c0_i32, %c0_i32_0 : i32, i32
  }
  func.func @transform_3(%arg0: i32, %arg1: i32, %arg2: i32) -> (i32, i32) {
    %c0_i32 = arith.constant 0 : i32
    %c0_i32_0 = arith.constant 0 : i32
    %c0_i32_1 = arith.constant 0 : i32
    return %c0_i32, %c0_i32_0 : i32, i32
  }
  func.func @transform_4(%arg0: i32, %arg1: i32, %arg2: i32) -> (i32, i32) {
    %c0_i32 = arith.constant 0 : i32
    %c0_i32_0 = arith.constant 0 : i32
    %c0_i32_1 = arith.constant 0 : i32
    return %c0_i32, %c0_i32_0 : i32, i32
  }
  func.func @transform_5(%arg0: i32, %arg1: i32, %arg2: i32) -> (i32, i32) {
    %c0_i32 = arith.constant 0 : i32
    %c0_i32_0 = arith.constant 0 : i32
    %c0_i32_1 = arith.constant 0 : i32
    return %c0_i32, %c0_i32_0 : i32, i32
  }
  func.func @transform_6(%arg0: i32, %arg1: i32, %arg2: i32) -> (i32, i32) {
    %c0_i32 = arith.constant 0 : i32
    %c0_i32_0 = arith.constant 0 : i32
    %c0_i32_1 = arith.constant 0 : i32
    return %c0_i32, %c0_i32_0 : i32, i32
  }
  func.func @transform_7(%arg0: i32, %arg1: i32, %arg2: i32) -> (i32, i32) {
    %c0_i32 = arith.constant 0 : i32
    %c0_i32_0 = arith.constant 0 : i32
    %c0_i32_1 = arith.constant 0 : i32
    return %c0_i32, %c0_i32_0 : i32, i32
  }
  func.func @transform_8(%arg0: i32, %arg1: i32, %arg2: i32) -> (i32, i32, i32, i32) {
    %c0_i32 = arith.constant 0 : i32
    %c0_i32_0 = arith.constant 0 : i32
    %c0_i32_1 = arith.constant 0 : i32
    return %arg0, %arg1, %c0_i32, %c0_i32_0 : i32, i32, i32, i32
  }
}

</mosaic_0001>

<llo_original>
// kernel: tpu_custom_call.1
$region0: #{tpu_custom_call.1}
  #allocation0 [shape = 'u32[]', space=smem, size = 0x4, offset = 0x4, fixed_abs, tag = 'smem constant byte address 0x4 - core index']
  #allocation1 [shape = 'u32[144,128]{1,0:T(1,128)}', space=vmem, size = 0x12000, scoped, tag = 'internal scratch']
  #allocation2 [shape = 'f32[1,1]{1,0:T(1,128)S(1)}', space=vmem, size = 0x200, scoped, tag = 'scoped memory for tpu_custom_call.1']
  %s0 = inlined_call_operand.vmem [shape: f32[2,200,61], index: 0, kind: input, shape index: {}]
  %s1 = inlined_call_operand.vmem [shape: f32[2,200,3], index: 1, kind: input, shape index: {}]
  %s2 = inlined_call_operand.vmem [shape: bf16[61,128], index: 2, kind: input, shape index: {}]
  %s3 = inlined_call_operand.vmem [shape: bf16[3,128], index: 3, kind: input, shape index: {}]
  %s4 = inlined_call_operand.vmem [shape: f32[1,128], index: 4, kind: input, shape index: {}]
  %s5 = inlined_call_operand.vmem [shape: f32[128,1], index: 5, kind: input, shape index: {}]
  %s6 = inlined_call_operand.<no memory space> [shape: f32[1,1], index: 6, kind: input, shape index: {}]
  %s7 = inlined_call_operand.vmem [shape: f32[2,1], index: 7, kind: input, shape index: {}]
  %s8 = inlined_call_operand.vmem [shape: f32[1,2,1,1], index: 8, kind: output, shape index: {}]
  %s9 = sld [smem:[#allocation0]]
  $region46: #{tpu_custom_call.1} parent=0
    _
  %s11 = ssub.s32 1, %s9
  %s12 = scalar_select 0, %s11, %s9
  %v13 = vstv %s6
  %14 = vst [vmem:[#allocation2] sm:$0x1] %v13
  // Predicated region
  $region2: #{tpu_custom_call.1} parent=0 // pred_check
    _
  $region3: #{tpu_custom_call.1} parent=0 // pred_check_branch
    %16 = sbr.rel (0) target = $region5
  $region4: #{tpu_custom_call.1} parent=0 // pred_region
    %s17 = sadd.s32 0, 0
    %s18 = smul.u32 25, %s17
    %p19 = scmp.lt.s32.totalorder %s18, 24
    %s20 = scalar_select %p19, %s18, 24
    %s21 = smul.addr %s20, 8
    %s22 = scalar_lea.vmem %s0, %s21
    %s23 = sadd.s32 0, 0
    %s24 = smul.u32 25, %s23
  $region5: #{tpu_custom_call.1} parent=0 // pred_fallthru
    _
  // Predicated region
  $region6: #{tpu_custom_call.1} parent=0 // pred_check
    _
  $region7: #{tpu_custom_call.1} parent=0 // pred_check_branch
    %26 = sbr.rel (0) target = $region9
  $region8: #{tpu_custom_call.1} parent=0 // pred_region
    %s27 = sadd.s32 0, 0
    %s28 = smul.u32 25, %s27
    %p29 = scmp.lt.s32.totalorder %s28, 24
    %s30 = scalar_select %p29, %s28, 24
    %s31 = smul.addr %s30, 8
    %s32 = scalar_lea.vmem %s1, %s31
    %s33 = sadd.s32 0, 0
    %s34 = smul.u32 25, %s33
  $region9: #{tpu_custom_call.1} parent=0 // pred_fallthru
    _
  // Predicated region
  $region10: #{tpu_custom_call.1} parent=0 // pred_check
    _
  $region11: #{tpu_custom_call.1} parent=0 // pred_check_branch
    %36 = sbr.rel (0) target = $region13
  $region12: #{tpu_custom_call.1} parent=0 // pred_region
    _
  $region13: #{tpu_custom_call.1} parent=0 // pred_fallthru
    _
  // Predicated region
  $region14: #{tpu_custom_call.1} parent=0 // pred_check
    _
  $region15: #{tpu_custom_call.1} parent=0 // pred_check_branch
    %38 = sbr.rel (0) target = $region17
  $region16: #{tpu_custom_call.1} parent=0 // pred_region
    _
  $region17: #{tpu_custom_call.1} parent=0 // pred_fallthru
    _
  // Predicated region
  $region18: #{tpu_custom_call.1} parent=0 // pred_check
    _
  $region19: #{tpu_custom_call.1} parent=0 // pred_check_branch
    %40 = sbr.rel (0) target = $region21
  $region20: #{tpu_custom_call.1} parent=0 // pred_region
    _
  $region21: #{tpu_custom_call.1} parent=0 // pred_fallthru
    _
  // Predicated region
  $region22: #{tpu_custom_call.1} parent=0 // pred_check
    _
  $region23: #{tpu_custom_call.1} parent=0 // pred_check_branch
    %42 = sbr.rel (0) target = $region25
  $region24: #{tpu_custom_call.1} parent=0 // pred_region
    _
  $region25: #{tpu_custom_call.1} parent=0 // pred_fallthru
    _
  // Predicated region
  $region26: #{tpu_custom_call.1} parent=0 // pred_check
    _
  $region27: #{tpu_custom_call.1} parent=0 // pred_check_branch
    %44 = sbr.rel (0) target = $region29
  $region28: #{tpu_custom_call.1} parent=0 // pred_region
    _
  $region29: #{tpu_custom_call.1} parent=0 // pred_fallthru
    _
  // Predicated region
  $region30: #{tpu_custom_call.1} parent=0 // pred_check
    _
  $region31: #{tpu_custom_call.1} parent=0 // pred_check_branch
    %46 = sbr.rel (0) target = $region33
  $region32: #{tpu_custom_call.1} parent=0 // pred_region
    _
  $region33: #{tpu_custom_call.1} parent=0 // pred_fallthru
    _
  %s47 = sadd.s32 0, 0
  %s48 = smul.u32 25, %s47
  %p49 = scmp.lt.s32.totalorder %s48, 24
  %s50 = scalar_select %p49, %s48, 24
  %s51 = smul.addr %s50, 8
  %s52 = scalar_lea.vmem %s0, %s51
  %s53 = sadd.s32 0, 0
  %s54 = smul.u32 25, %s53
  %p55 = scmp.lt.s32.totalorder %s54, 24
  %s56 = scalar_select %p55, %s54, 24
  %s57 = smul.addr %s56, 8
  %s58 = scalar_lea.vmem %s1, %s57
  %s59 = sadd.s32 0, 0
  %s60 = smul.u32 25, %s59
  %p61 = scmp.lt.s32.totalorder %s60, 24
  %s62 = scalar_select %p61, %s60, 24
  %s63 = smul.addr %s62, 8
  %s64 = scalar_lea.vmem %s0, %s63
  %s65 = sadd.s32 0, 0
  %s66 = smul.u32 25, %s65
  %s67 = sadd.s32 0, 0
  %s68 = smul.u32 25, %s67
  %p69 = scmp.lt.s32.totalorder %s68, 24
  %s70 = scalar_select %p69, %s68, 24
  %s71 = smul.addr %s70, 8
  %s72 = scalar_lea.vmem %s1, %s71
  %s73 = sadd.s32 0, 0
  %s74 = smul.u32 25, %s73
  %p76 = scmp.eq.s32.totalorder 0, 0
  // Predicated region
  $region34: #{tpu_custom_call.1} parent=0 // pred_check
    %p77 = pneg %p76
  $region35: #{tpu_custom_call.1} parent=0 // pred_check_branch
    %79 = sbr.rel (%p77) target = $region37
  $region36: #{tpu_custom_call.1} parent=0 // pred_region
    %vm80 = vcmask 0
    %81 = vst.msk [vmem:[%s8] sm:$0x1] %vm80, -inf
    %82 = vst.msk [vmem:[%s8 + $0x1] sm:$0x1] %vm80, -inf
  $region37: #{tpu_custom_call.1} parent=0 // pred_fallthru
    _
  %v83 = vld [vmem:[%s2] sm:$0xf]
  %v84 = vld [vmem:[%s2 + $0x4] sm:$0xf]
  %v85 = vld [vmem:[%s2 + $0x8] sm:$0xf]
  %v86 = vld [vmem:[%s2 + $0xc] sm:$0xf]
  %v87 = vld [vmem:[%s2 + $0x10] sm:$0xf]
  %v88 = vld [vmem:[%s2 + $0x14] sm:$0xf]
  %v89 = vld [vmem:[%s2 + $0x18] sm:$0xf]
  %v90 = vld [vmem:[%s2 + $0x1c] sm:$0x7]
  %v91 = vld [vmem:[%s3] sm:$0x3]
  %v92 = vld [vmem:[%s4] sm:$0x1]
  %v93 = vld [vmem:[%s5] sm:$0xff]
  %v94 = vld [vmem:[%s5 + $0x8] sm:$0xff]
  %v95 = vld [vmem:[%s5 + $0x10] sm:$0xff]
  %v96 = vld [vmem:[%s5 + $0x18] sm:$0xff]
  %v97 = vld [vmem:[%s5 + $0x20] sm:$0xff]
  %v98 = vld [vmem:[%s5 + $0x28] sm:$0xff]
  %v99 = vld [vmem:[%s5 + $0x30] sm:$0xff]
  %v100 = vld [vmem:[%s5 + $0x38] sm:$0xff]
  %v101 = vld [vmem:[%s5 + $0x40] sm:$0xff]
  %v102 = vld [vmem:[%s5 + $0x48] sm:$0xff]
  %v103 = vld [vmem:[%s5 + $0x50] sm:$0xff]
  %v104 = vld [vmem:[%s5 + $0x58] sm:$0xff]
  %v105 = vld [vmem:[%s5 + $0x60] sm:$0xff]
  %v106 = vld [vmem:[%s5 + $0x68] sm:$0xff]
  %v107 = vld [vmem:[%s5 + $0x70] sm:$0xff]
  %v108 = vld [vmem:[%s5 + $0x78] sm:$0xff]
  %v109 = vld [vmem:[#allocation2] sm:$0x1]
  %v110 = vld [vmem:[%s7] sm:$0x1]
  %v111 = vld [vmem:[%s7 + $0x1] sm:$0x1]
  %v112 = vld [vmem:[%s64] sm:$0xff]
  %v113 = vld [vmem:[%s64 + $0x8] sm:$0xff]
  %v114 = vld [vmem:[%s64 + $0x10] sm:$0xff]
  %v115 = vld [vmem:[%s64 + $0x18] sm:$0xff]
  %v116 = vld [vmem:[%s64 + $0x20] sm:$0xff]
  %v117 = vld [vmem:[%s64 + $0x28] sm:$0xff]
  %v118 = vld [vmem:[%s64 + $0x30] sm:$0xff]
  %v119 = vld [vmem:[%s64 + $0x38] sm:$0xff]
  %v120 = vld [vmem:[%s64 + $0x40] sm:$0xff]
  %v121 = vld [vmem:[%s64 + $0x48] sm:$0xff]
  %v122 = vld [vmem:[%s64 + $0x50] sm:$0xff]
  %v123 = vld [vmem:[%s64 + $0x58] sm:$0xff]
  %v124 = vld [vmem:[%s64 + $0x60] sm:$0xff]
  %v125 = vld [vmem:[%s64 + $0x68] sm:$0xff]
  %v126 = vld [vmem:[%s64 + $0x70] sm:$0xff]
  %v127 = vld [vmem:[%s64 + $0x78] sm:$0xff]
  %v128 = vld [vmem:[%s64 + $0x80] sm:$0xff]
  %v129 = vld [vmem:[%s64 + $0x88] sm:$0xff]
  %v130 = vld [vmem:[%s64 + $0x90] sm:$0xff]
  %v131 = vld [vmem:[%s64 + $0x98] sm:$0xff]
  %v132 = vld [vmem:[%s64 + $0xa0] sm:$0xff]
  %v133 = vld [vmem:[%s64 + $0xa8] sm:$0xff]
  %v134 = vld [vmem:[%s64 + $0xb0] sm:$0xff]
  %v135 = vld [vmem:[%s64 + $0xb8] sm:$0xff]
  %v136 = vld [vmem:[%s64 + $0xc0] sm:$0xff]
  %v137 = vpack.c.bf16 %v113, %v112
  %v138 = vpack.c.bf16 %v115, %v114
  %v139 = vpack.c.bf16 %v117, %v116
  %v140 = vpack.c.bf16 %v119, %v118
  %v141 = vpack.c.bf16 %v121, %v120
  %v142 = vpack.c.bf16 %v123, %v122
  %v143 = vpack.c.bf16 %v125, %v124
  %v144 = vpack.c.bf16 %v127, %v126
  %v145 = vpack.c.bf16 %v129, %v128
  %v146 = vpack.c.bf16 %v131, %v130
  %v147 = vpack.c.bf16 %v133, %v132
  %v148 = vpack.c.bf16 %v135, %v134
  %v149 = vpack.c.bf16 %v136, %v136
  %v150 = vld [vmem:[%s72] sm:$0xff]
  %v151 = vld [vmem:[%s72 + $0x8] sm:$0xff]
  %v152 = vld [vmem:[%s72 + $0x10] sm:$0xff]
  %v153 = vld [vmem:[%s72 + $0x18] sm:$0xff]
  %v154 = vld [vmem:[%s72 + $0x20] sm:$0xff]
  %v155 = vld [vmem:[%s72 + $0x28] sm:$0xff]
  %v156 = vld [vmem:[%s72 + $0x30] sm:$0xff]
  %v157 = vld [vmem:[%s72 + $0x38] sm:$0xff]
  %v158 = vld [vmem:[%s72 + $0x40] sm:$0xff]
  %v159 = vld [vmem:[%s72 + $0x48] sm:$0xff]
  %v160 = vld [vmem:[%s72 + $0x50] sm:$0xff]
  %v161 = vld [vmem:[%s72 + $0x58] sm:$0xff]
  %v162 = vld [vmem:[%s72 + $0x60] sm:$0xff]
  %v163 = vld [vmem:[%s72 + $0x68] sm:$0xff]
  %v164 = vld [vmem:[%s72 + $0x70] sm:$0xff]
  %v165 = vld [vmem:[%s72 + $0x78] sm:$0xff]
  %v166 = vld [vmem:[%s72 + $0x80] sm:$0xff]
  %v167 = vld [vmem:[%s72 + $0x88] sm:$0xff]
  %v168 = vld [vmem:[%s72 + $0x90] sm:$0xff]
  %v169 = vld [vmem:[%s72 + $0x98] sm:$0xff]
  %v170 = vld [vmem:[%s72 + $0xa0] sm:$0xff]
  %v171 = vld [vmem:[%s72 + $0xa8] sm:$0xff]
  %v172 = vld [vmem:[%s72 + $0xb0] sm:$0xff]
  %v173 = vld [vmem:[%s72 + $0xb8] sm:$0xff]
  %v174 = vld [vmem:[%s72 + $0xc0] sm:$0xff]
  %v175 = vpack.c.bf16 %v151, %v150
  %v176 = vpack.c.bf16 %v153, %v152
  %v177 = vpack.c.bf16 %v155, %v154
  %v178 = vpack.c.bf16 %v157, %v156
  %v179 = vpack.c.bf16 %v159, %v158
  %v180 = vpack.c.bf16 %v161, %v160
  %v181 = vpack.c.bf16 %v163, %v162
  %v182 = vpack.c.bf16 %v165, %v164
  %v183 = vpack.c.bf16 %v167, %v166
  %v184 = vpack.c.bf16 %v169, %v168
  %v185 = vpack.c.bf16 %v171, %v170
  %v186 = vpack.c.bf16 %v173, %v172
  %v187 = vpack.c.bf16 %v174, %v174
  %vm188 = vcmask 23552
  %v190 = vsel %vm188, %v175, 0
  %v193 = vsel %vm188, %v176, 0
  %v196 = vsel %vm188, %v177, 0
  %v199 = vsel %vm188, %v178, 0
  %v202 = vsel %vm188, %v179, 0
  %v205 = vsel %vm188, %v180, 0
  %v208 = vsel %vm188, %v181, 0
  %v211 = vsel %vm188, %v182, 0
  %v214 = vsel %vm188, %v183, 0
  %v217 = vsel %vm188, %v184, 0
  %v220 = vsel %vm188, %v185, 0
  %v223 = vsel %vm188, %v186, 0
  %v226 = vsel %vm188, %v187, 0
  %vm228 = vcmask 1040384
  %vm229 = vcmask 1041408
  %v230 = vsel %vm228, 4294967295, 65535
  %v231 = vsel %vm229, %v230, 0
  %v233 = vand.u32 %v91, %v231
  %235 = vmatprep.subr.bf16.mxu0 0
  %236 = vmatpush1.bf16.msra.mxu0 %v233
  %237 = vmatprep.subr.bf16.mxu0 0
  %238 = vmatpush1.bf16.msra.mxu0 0
  %239 = vmatprep.subr.bf16.mxu0 0
  %240 = vmatpush1.bf16.msra.mxu0 0
  %241 = vmatprep.subr.bf16.mxu0 0
  %242 = vmatpush1.bf16.msra.mxu0 0
  %243 = vmatprep.subr.bf16.mxu0 0
  %244 = vmatpush1.bf16.msra.mxu0 0
  %245 = vmatprep.subr.bf16.mxu0 0
  %246 = vmatpush1.bf16.msra.mxu0 0
  %247 = vmatprep.subr.bf16.mxu0 0
  %248 = vmatpush1.bf16.msra.mxu0 0
  %249 = vmatprep.subr.bf16.mxu0 0
  %250 = vmatpush1.bf16.msra.mxu0 0
  %251 = vmatprep.subr.bf16.mxu0 0
  %252 = vmatpush1.bf16.msra.mxu0 0
  %253 = vmatprep.subr.bf16.mxu0 0
  %254 = vmatpush1.bf16.msra.mxu0 0
  %255 = vmatprep.subr.bf16.mxu0 0
  %256 = vmatpush1.bf16.msra.mxu0 0
  %257 = vmatprep.subr.bf16.mxu0 0
  %258 = vmatpush1.bf16.msra.mxu0 0
  %259 = vmatprep.subr.bf16.mxu0 0
  %260 = vmatpush1.bf16.msra.mxu0 0
  %261 = vmatprep.subr.bf16.mxu0 0
  %262 = vmatpush1.bf16.msra.mxu0 0
  %263 = vmatprep.subr.bf16.mxu0 0
  %264 = vmatpush1.bf16.msra.mxu0 0
  %265 = vmatprep.subr.bf16.mxu0 0
  %266 = vmatpush1.bf16.msra.mxu0 0
  %267 = vmatprep.mubr.bf16.mxu0 0
  %268 = vmatmul.mubr.bf16.gmra.mrb[0].mxu0 %v190
  %v269 = vpop.f32.mrb[0].mxu0
  %v270 = vadd.f32 0.0, %v269
  %v271 = vpop.f32.mrb[0].mxu0
  %v272 = vpop.f32.mrb[0].mxu0
  %v273 = vadd.f32 0.0, %v272
  %v274 = vpop.f32.mrb[0].mxu0
  %275 = vmatprep.mubr.bf16.mxu0 0
  %276 = vmatmul.mubr.bf16.gmra.mrb[0].mxu0 %v193
  %v277 = vpop.f32.mrb[0].mxu0
  %v278 = vadd.f32 0.0, %v277
  %v279 = vpop.f32.mrb[0].mxu0
  %v280 = vpop.f32.mrb[0].mxu0
  %v281 = vadd.f32 0.0, %v280
  %v282 = vpop.f32.mrb[0].mxu0
  %283 = vmatprep.mubr.bf16.mxu0 0
  %284 = vmatmul.mubr.bf16.gmra.mrb[0].mxu0 %v196
  %v285 = vpop.f32.mrb[0].mxu0
  %v286 = vadd.f32 0.0, %v285
  %v287 = vpop.f32.mrb[0].mxu0
  %v288 = vpop.f32.mrb[0].mxu0
  %v289 = vadd.f32 0.0, %v288
  %v290 = vpop.f32.mrb[0].mxu0
  %291 = vmatprep.mubr.bf16.mxu0 0
  %292 = vmatmul.mubr.bf16.gmra.mrb[0].mxu0 %v199
  %v293 = vpop.f32.mrb[0].mxu0
  %v294 = vadd.f32 0.0, %v293
  %v295 = vpop.f32.mrb[0].mxu0
  %v296 = vpop.f32.mrb[0].mxu0
  %v297 = vadd.f32 0.0, %v296
  %v298 = vpop.f32.mrb[0].mxu0
  %299 = vmatprep.mubr.bf16.mxu0 0
  %300 = vmatmul.mubr.bf16.gmra.mrb[0].mxu0 %v202
  %v301 = vpop.f32.mrb[0].mxu0
  %v302 = vadd.f32 0.0, %v301
  %v303 = vpop.f32.mrb[0].mxu0
  %v304 = vpop.f32.mrb[0].mxu0
  %v305 = vadd.f32 0.0, %v304
  %v306 = vpop.f32.mrb[0].mxu0
  %307 = vmatprep.mubr.bf16.mxu0 0
  %308 = vmatmul.mubr.bf16.gmra.mrb[0].mxu0 %v205
  %v309 = vpop.f32.mrb[0].mxu0
  %v310 = vadd.f32 0.0, %v309
  %v311 = vpop.f32.mrb[0].mxu0
  %v312 = vpop.f32.mrb[0].mxu0
  %v313 = vadd.f32 0.0, %v312
  %v314 = vpop.f32.mrb[0].mxu0
  %315 = vmatprep.mubr.bf16.mxu0 0
  %316 = vmatmul.mubr.bf16.gmra.mrb[0].mxu0 %v208
  %v317 = vpop.f32.mrb[0].mxu0
  %v318 = vadd.f32 0.0, %v317
  %v319 = vpop.f32.mrb[0].mxu0
  %v320 = vpop.f32.mrb[0].mxu0
  %v321 = vadd.f32 0.0, %v320
  %v322 = vpop.f32.mrb[0].mxu0
  %323 = vmatprep.mubr.bf16.mxu0 0
  %324 = vmatmul.mubr.bf16.gmra.mrb[0].mxu0 %v211
  %v325 = vpop.f32.mrb[0].mxu0
  %v326 = vadd.f32 0.0, %v325
  %v327 = vpop.f32.mrb[0].mxu0
  %v328 = vpop.f32.mrb[0].mxu0
  %v329 = vadd.f32 0.0, %v328
  %v330 = vpop.f32.mrb[0].mxu0
  %331 = vmatprep.mubr.bf16.mxu0 0
  %332 = vmatmul.mubr.bf16.gmra.mrb[0].mxu0 %v214
  %v333 = vpop.f32.mrb[0].mxu0
  %v334 = vadd.f32 0.0, %v333
  %v335 = vpop.f32.mrb[0].mxu0
  %v336 = vpop.f32.mrb[0].mxu0
  %v337 = vadd.f32 0.0, %v336
  %v338 = vpop.f32.mrb[0].mxu0
  %339 = vmatprep.mubr.bf16.mxu0 0
  %340 = vmatmul.mubr.bf16.gmra.mrb[0].mxu0 %v217
  %v341 = vpop.f32.mrb[0].mxu0
  %v342 = vadd.f32 0.0, %v341
  %v343 = vpop.f32.mrb[0].mxu0
  %v344 = vpop.f32.mrb[0].mxu0
  %v345 = vadd.f32 0.0, %v344
  %v346 = vpop.f32.mrb[0].mxu0
  %347 = vmatprep.mubr.bf16.mxu0 0
  %348 = vmatmul.mubr.bf16.gmra.mrb[0].mxu0 %v220
  %v349 = vpop.f32.mrb[0].mxu0
  %v350 = vadd.f32 0.0, %v349
  %v351 = vpop.f32.mrb[0].mxu0
  %v352 = vpop.f32.mrb[0].mxu0
  %v353 = vadd.f32 0.0, %v352
  %v354 = vpop.f32.mrb[0].mxu0
  %355 = vmatprep.mubr.bf16.mxu0 0
  %356 = vmatmul.mubr.bf16.gmra.mrb[0].mxu0 %v223
  %v357 = vpop.f32.mrb[0].mxu0
  %v358 = vadd.f32 0.0, %v357
  %v359 = vpop.f32.mrb[0].mxu0
  %v360 = vpop.f32.mrb[0].mxu0
  %v361 = vadd.f32 0.0, %v360
  %v362 = vpop.f32.mrb[0].mxu0
  %363 = vmatprep.mubr.bf16.mxu0 0
  %364 = vmatmul.mubr.bf16.gmra.mrb[0].mxu0 %v226
  %v365 = vpop.f32.mrb[0].mxu0
  %v366 = vadd.f32 0.0, %v365
  %v367 = vpop.f32.mrb[0].mxu0
  %v368 = vpop.f32.mrb[0].mxu0
  %v369 = vpop.f32.mrb[0].mxu0
  %370 = vdwg.mxu0
  %v379 = vunpack.c.l.b16 %v83
  %v380 = vunpack.c.l.b16 %v84
  %v381 = vunpack.c.l.b16 %v85
  %v382 = vunpack.c.l.b16 %v86
  %v383 = vunpack.c.l.b16 %v87
  %v384 = vunpack.c.l.b16 %v88
  %v385 = vunpack.c.l.b16 %v89
  %v386 = vunpack.c.l.b16 %v90
  %v387 = vpack.c.b16 %v380, %v379
  %v388 = vpack.c.b16 %v382, %v381
  %v389 = vpack.c.b16 %v384, %v383
  %v390 = vpack.c.b16 %v386, %v385
  %vm394 = vcmask 498688
  %v396 = vsel %vm394, %v137, 0
  %v399 = vsel %vm394, %v138, 0
  %v402 = vsel %vm394, %v139, 0
  %v405 = vsel %vm394, %v140, 0
  %v408 = vsel %vm394, %v141, 0
  %v411 = vsel %vm394, %v142, 0
  %v414 = vsel %vm394, %v143, 0
  %v417 = vsel %vm394, %v144, 0
  %v420 = vsel %vm394, %v145, 0
  %v423 = vsel %vm394, %v146, 0
  %v426 = vsel %vm394, %v147, 0
  %v429 = vsel %vm394, %v148, 0
  %v432 = vsel %vm394, %v149, 0
  %vm434 = vcmask 1045504
  %vm435 = vcmask 1046528
  %v436 = vsel %vm434, 4294967295, 65535
  %v437 = vsel %vm435, %v436, 0
  %v439 = vand.u32 %v390, %v437
  %441 = vmatprep.subr.bf16.mxu0 0
  %442 = vmatpush1.bf16.msra.mxu0 %v387
  %443 = vmatprep.subr.bf16.mxu0 0
  %444 = vmatpush1.bf16.msra.mxu0 %v388
  %445 = vmatprep.subr.bf16.mxu0 0
  %446 = vmatpush1.bf16.msra.mxu0 %v389
  %447 = vmatprep.subr.bf16.mxu0 0
  %448 = vmatpush1.bf16.msra.mxu0 %v439
  %449 = vmatprep.subr.bf16.mxu0 0
  %450 = vmatpush1.bf16.msra.mxu0 0
  %451 = vmatprep.subr.bf16.mxu0 0
  %452 = vmatpush1.bf16.msra.mxu0 0
  %453 = vmatprep.subr.bf16.mxu0 0
  %454 = vmatpush1.bf16.msra.mxu0 0
  %455 = vmatprep.subr.bf16.mxu0 0
  %456 = vmatpush1.bf16.msra.mxu0 0
  %457 = vmatprep.subr.bf16.mxu0 0
  %458 = vmatpush1.bf16.msra.mxu0 0
  %459 = vmatprep.subr.bf16.mxu0 0
  %460 = vmatpush1.bf16.msra.mxu0 0
  %461 = vmatprep.subr.bf16.mxu0 0
  %462 = vmatpush1.bf16.msra.mxu0 0
  %463 = vmatprep.subr.bf16.mxu0 0
  %464 = vmatpush1.bf16.msra.mxu0 0
  %465 = vmatprep.subr.bf16.mxu0 0
  %466 = vmatpush1.bf16.msra.mxu0 0
  %467 = vmatprep.subr.bf16.mxu0 0
  %468 = vmatpush1.bf16.msra.mxu0 0
  %469 = vmatprep.subr.bf16.mxu0 0
  %470 = vmatpush1.bf16.msra.mxu0 0
  %471 = vmatprep.subr.bf16.mxu0 0
  %472 = vmatpush1.bf16.msra.mxu0 0
  %473 = vmatprep.mubr.bf16.mxu0 0
  %474 = vmatmul.mubr.bf16.gmra.mrb[0].mxu0 %v396
  %v475 = vpop.f32.mrb[0].mxu0
  %v476 = vadd.f32 %v270, %v475
  %v477 = vpop.f32.mrb[0].mxu0
  %v478 = vpop.f32.mrb[0].mxu0
  %v479 = vadd.f32 %v273, %v478
  %v480 = vpop.f32.mrb[0].mxu0
  %481 = vmatprep.mubr.bf16.mxu0 0
  %482 = vmatmul.mubr.bf16.gmra.mrb[0].mxu0 %v399
  %v483 = vpop.f32.mrb[0].mxu0
  %v484 = vadd.f32 %v278, %v483
  %v485 = vpop.f32.mrb[0].mxu0
  %v486 = vpop.f32.mrb[0].mxu0
  %v487 = vadd.f32 %v281, %v486
  %v488 = vpop.f32.mrb[0].mxu0
  %489 = vmatprep.mubr.bf16.mxu0 0
  %490 = vmatmul.mubr.bf16.gmra.mrb[0].mxu0 %v402
  %v491 = vpop.f32.mrb[0].mxu0
  %v492 = vadd.f32 %v286, %v491
  %v493 = vpop.f32.mrb[0].mxu0
  %v494 = vpop.f32.mrb[0].mxu0
  %v495 = vadd.f32 %v289, %v494
  %v496 = vpop.f32.mrb[0].mxu0
  %497 = vmatprep.mubr.bf16.mxu0 0
  %498 = vmatmul.mubr.bf16.gmra.mrb[0].mxu0 %v405
  %v499 = vpop.f32.mrb[0].mxu0
  %v500 = vadd.f32 %v294, %v499
  %v501 = vpop.f32.mrb[0].mxu0
  %v502 = vpop.f32.mrb[0].mxu0
  %v503 = vadd.f32 %v297, %v502
  %v504 = vpop.f32.mrb[0].mxu0
  %505 = vmatprep.mubr.bf16.mxu0 0
  %506 = vmatmul.mubr.bf16.gmra.mrb[0].mxu0 %v408
  %v507 = vpop.f32.mrb[0].mxu0
  %v508 = vadd.f32 %v302, %v507
  %v509 = vpop.f32.mrb[0].mxu0
  %v510 = vpop.f32.mrb[0].mxu0
  %v511 = vadd.f32 %v305, %v510
  %v512 = vpop.f32.mrb[0].mxu0
  %513 = vmatprep.mubr.bf16.mxu0 0
  %514 = vmatmul.mubr.bf16.gmra.mrb[0].mxu0 %v411
  %v515 = vpop.f32.mrb[0].mxu0
  %v516 = vadd.f32 %v310, %v515
  %v517 = vpop.f32.mrb[0].mxu0
  %v518 = vpop.f32.mrb[0].mxu0
  %v519 = vadd.f32 %v313, %v518
  %v520 = vpop.f32.mrb[0].mxu0
  %521 = vmatprep.mubr.bf16.mxu0 0
  %522 = vmatmul.mubr.bf16.gmra.mrb[0].mxu0 %v414
  %v523 = vpop.f32.mrb[0].mxu0
  %v524 = vadd.f32 %v318, %v523
  %v525 = vpop.f32.mrb[0].mxu0
  %v526 = vpop.f32.mrb[0].mxu0
  %v527 = vadd.f32 %v321, %v526
  %v528 = vpop.f32.mrb[0].mxu0
  %529 = vmatprep.mubr.bf16.mxu0 0
  %530 = vmatmul.mubr.bf16.gmra.mrb[0].mxu0 %v417
  %v531 = vpop.f32.mrb[0].mxu0
  %v532 = vadd.f32 %v326, %v531
  %v533 = vpop.f32.mrb[0].mxu0
  %v534 = vpop.f32.mrb[0].mxu0
  %v535 = vadd.f32 %v329, %v534
  %v536 = vpop.f32.mrb[0].mxu0
  %537 = vmatprep.mubr.bf16.mxu0 0
  %538 = vmatmul.mubr.bf16.gmra.mrb[0].mxu0 %v420
  %v539 = vpop.f32.mrb[0].mxu0
  %v540 = vadd.f32 %v334, %v539
  %v541 = vpop.f32.mrb[0].mxu0
  %v542 = vpop.f32.mrb[0].mxu0
  %v543 = vadd.f32 %v337, %v542
  %v544 = vpop.f32.mrb[0].mxu0
  %545 = vmatprep.mubr.bf16.mxu0 0
  %546 = vmatmul.mubr.bf16.gmra.mrb[0].mxu0 %v423
  %v547 = vpop.f32.mrb[0].mxu0
  %v548 = vadd.f32 %v342, %v547
  %v549 = vpop.f32.mrb[0].mxu0
  %v550 = vpop.f32.mrb[0].mxu0
  %v551 = vadd.f32 %v345, %v550
  %v552 = vpop.f32.mrb[0].mxu0
  %553 = vmatprep.mubr.bf16.mxu0 0
  %554 = vmatmul.mubr.bf16.gmra.mrb[0].mxu0 %v426
  %v555 = vpop.f32.mrb[0].mxu0
  %v556 = vadd.f32 %v350, %v555
  %v557 = vpop.f32.mrb[0].mxu0
  %v558 = vpop.f32.mrb[0].mxu0
  %v559 = vadd.f32 %v353, %v558
  %v560 = vpop.f32.mrb[0].mxu0
  %561 = vmatprep.mubr.bf16.mxu0 0
  %562 = vmatmul.mubr.bf16.gmra.mrb[0].mxu0 %v429
  %v563 = vpop.f32.mrb[0].mxu0
  %v564 = vadd.f32 %v358, %v563
  %v565 = vpop.f32.mrb[0].mxu0
  %v566 = vpop.f32.mrb[0].mxu0
  %v567 = vadd.f32 %v361, %v566
  %v568 = vpop.f32.mrb[0].mxu0
  %569 = vmatprep.mubr.bf16.mxu0 0
  %570 = vmatmul.mubr.bf16.gmra.mrb[0].mxu0 %v432
  %v571 = vpop.f32.mrb[0].mxu0
  %v572 = vadd.f32 %v366, %v571
  %v573 = vpop.f32.mrb[0].mxu0
  %v574 = vpop.f32.mrb[0].mxu0
  %v575 = vpop.f32.mrb[0].mxu0
  %576 = vdwg.mxu0
  %v578 = vlaneseq
  %v579 = vshrl.u32 %v578, 7
  %v580 = vsub.s32 0, %v579
  %v581 = vrot.slane %v92, %v580
  %v583 = vadd.f32 %v476, %v581
  %v584 = vadd.f32 %v479, %v581
  %v585 = vadd.f32 %v484, %v581
  %v586 = vadd.f32 %v487, %v581
  %v587 = vadd.f32 %v492, %v581
  %v588 = vadd.f32 %v495, %v581
  %v589 = vadd.f32 %v500, %v581
  %v590 = vadd.f32 %v503, %v581
  %v591 = vadd.f32 %v508, %v581
  %v592 = vadd.f32 %v511, %v581
  %v593 = vadd.f32 %v516, %v581
  %v594 = vadd.f32 %v519, %v581
  %v595 = vadd.f32 %v524, %v581
  %v596 = vadd.f32 %v527, %v581
  %v597 = vadd.f32 %v532, %v581
  %v598 = vadd.f32 %v535, %v581
  %v599 = vadd.f32 %v540, %v581
  %v600 = vadd.f32 %v543, %v581
  %v601 = vadd.f32 %v548, %v581
  %v602 = vadd.f32 %v551, %v581
  %v603 = vadd.f32 %v556, %v581
  %v604 = vadd.f32 %v559, %v581
  %v605 = vadd.f32 %v564, %v581
  %v606 = vadd.f32 %v567, %v581
  %v607 = vadd.f32 %v572, %v581
  %v608 = vmax.f32 %v583, 0.0
  %v609 = vmax.f32 %v584, 0.0
  %v610 = vmax.f32 %v585, 0.0
  %v611 = vmax.f32 %v586, 0.0
  %v612 = vmax.f32 %v587, 0.0
  %v613 = vmax.f32 %v588, 0.0
  %v614 = vmax.f32 %v589, 0.0
  %v615 = vmax.f32 %v590, 0.0
  %v616 = vmax.f32 %v591, 0.0
  %v617 = vmax.f32 %v592, 0.0
  %v618 = vmax.f32 %v593, 0.0
  %v619 = vmax.f32 %v594, 0.0
  %v620 = vmax.f32 %v595, 0.0
  %v621 = vmax.f32 %v596, 0.0
  %v622 = vmax.f32 %v597, 0.0
  %v623 = vmax.f32 %v598, 0.0
  %v624 = vmax.f32 %v599, 0.0
  %v625 = vmax.f32 %v600, 0.0
  %v626 = vmax.f32 %v601, 0.0
  %v627 = vmax.f32 %v602, 0.0
  %v628 = vmax.f32 %v603, 0.0
  %v629 = vmax.f32 %v604, 0.0
  %v630 = vmax.f32 %v605, 0.0
  %v631 = vmax.f32 %v606, 0.0
  %v632 = vmax.f32 %v607, 0.0
  %v634 = vlaneseq
  %v635 = vshrl.u32 %v634, 7
  %v636 = vsub.s32 0, %v635
  %v637 = vrot.slane %v109, %v636
  %639 = vmatprep.subr.mxu0 0.0
  %640 = vmatpush1.msra.mxu0 %v93
  %641 = vmatprep.subr.mxu0 0.0
  %642 = vmatpush1.msra.mxu0 %v94
  %643 = vmatprep.subr.mxu0 0.0
  %644 = vmatpush1.msra.mxu0 %v95
  %645 = vmatprep.subr.mxu0 0.0
  %646 = vmatpush1.msra.mxu0 %v96
  %647 = vmatprep.subr.mxu0 0.0
  %648 = vmatpush1.msra.mxu0 %v97
  %649 = vmatprep.subr.mxu0 0.0
  %650 = vmatpush1.msra.mxu0 %v98
  %651 = vmatprep.subr.mxu0 0.0
  %652 = vmatpush1.msra.mxu0 %v99
  %653 = vmatprep.subr.mxu0 0.0
  %654 = vmatpush1.msra.mxu0 %v100
  %655 = vmatprep.subr.mxu0 0.0
  %656 = vmatpush1.msra.mxu0 %v101
  %657 = vmatprep.subr.mxu0 0.0
  %658 = vmatpush1.msra.mxu0 %v102
  %659 = vmatprep.subr.mxu0 0.0
  %660 = vmatpush1.msra.mxu0 %v103
  %661 = vmatprep.subr.mxu0 0.0
  %662 = vmatpush1.msra.mxu0 %v104
  %663 = vmatprep.subr.mxu0 0.0
  %664 = vmatpush1.msra.mxu0 %v105
  %665 = vmatprep.subr.mxu0 0.0
  %666 = vmatpush1.msra.mxu0 %v106
  %667 = vmatprep.subr.mxu0 0.0
  %668 = vmatpush1.msra.mxu0 %v107
  %669 = vmatprep.subr.mxu0 0.0
  %670 = vmatpush1.msra.mxu0 %v108
  %671 = vmatprep.subr.mxu0 0.0
  %672 = vmatpush1.msra.mxu0 0.0
  %673 = vmatprep.subr.mxu0 0.0
  %674 = vmatpush1.msra.mxu0 0.0
  %675 = vmatprep.subr.mxu0 0.0
  %676 = vmatpush1.msra.mxu0 0.0
  %677 = vmatprep.subr.mxu0 0.0
  %678 = vmatpush1.msra.mxu0 0.0
  %679 = vmatprep.subr.mxu0 0.0
  %680 = vmatpush1.msra.mxu0 0.0
  %681 = vmatprep.subr.mxu0 0.0
  %682 = vmatpush1.msra.mxu0 0.0
  %683 = vmatprep.subr.mxu0 0.0
  %684 = vmatpush1.msra.mxu0 0.0
  %685 = vmatprep.subr.mxu0 0.0
  %686 = vmatpush1.msra.mxu0 0.0
  %687 = vmatprep.subr.mxu0 0.0
  %688 = vmatpush1.msra.mxu0 0.0
  %689 = vmatprep.subr.mxu0 0.0
  %690 = vmatpush1.msra.mxu0 0.0
  %691 = vmatprep.subr.mxu0 0.0
  %692 = vmatpush1.msra.mxu0 0.0
  %693 = vmatprep.subr.mxu0 0.0
  %694 = vmatpush1.msra.mxu0 0.0
  %695 = vmatprep.subr.mxu0 0.0
  %696 = vmatpush1.msra.mxu0 0.0
  %697 = vmatprep.subr.mxu0 0.0
  %698 = vmatpush1.msra.mxu0 0.0
  %699 = vmatprep.subr.mxu0 0.0
  %700 = vmatpush1.msra.mxu0 0.0
  %701 = vmatprep.subr.mxu0 0.0
  %702 = vmatpush1.msra.mxu0 0.0
  %703 = vmatprep.mubr.f32.mxu0 0.0
  %704 = vmatmul.mubr.f32.gmra.mrb[0].mxu0 %v608
  %v705 = vpop.f32.mrb[0].mxu0
  %v706 = vadd.f32 %v637, %v705
  %v707 = vpop.f32.mrb[0].mxu0
  %708 = vmatprep.mubr.f32.mxu0 0.0
  %709 = vmatmul.mubr.f32.gmra.mrb[0].mxu0 %v609
  %v710 = vpop.f32.mrb[0].mxu0
  %v711 = vadd.f32 %v637, %v710
  %v712 = vpop.f32.mrb[0].mxu0
  %713 = vmatprep.mubr.f32.mxu0 0.0
  %714 = vmatmul.mubr.f32.gmra.mrb[0].mxu0 %v610
  %v715 = vpop.f32.mrb[0].mxu0
  %v716 = vadd.f32 %v637, %v715
  %v717 = vpop.f32.mrb[0].mxu0
  %718 = vmatprep.mubr.f32.mxu0 0.0
  %719 = vmatmul.mubr.f32.gmra.mrb[0].mxu0 %v611
  %v720 = vpop.f32.mrb[0].mxu0
  %v721 = vadd.f32 %v637, %v720
  %v722 = vpop.f32.mrb[0].mxu0
  %723 = vmatprep.mubr.f32.mxu0 0.0
  %724 = vmatmul.mubr.f32.gmra.mrb[0].mxu0 %v612
  %v725 = vpop.f32.mrb[0].mxu0
  %v726 = vadd.f32 %v637, %v725
  %v727 = vpop.f32.mrb[0].mxu0
  %728 = vmatprep.mubr.f32.mxu0 0.0
  %729 = vmatmul.mubr.f32.gmra.mrb[0].mxu0 %v613
  %v730 = vpop.f32.mrb[0].mxu0
  %v731 = vadd.f32 %v637, %v730
  %v732 = vpop.f32.mrb[0].mxu0
  %733 = vmatprep.mubr.f32.mxu0 0.0
  %734 = vmatmul.mubr.f32.gmra.mrb[0].mxu0 %v614
  %v735 = vpop.f32.mrb[0].mxu0
  %v736 = vadd.f32 %v637, %v735
  %v737 = vpop.f32.mrb[0].mxu0
  %738 = vmatprep.mubr.f32.mxu0 0.0
  %739 = vmatmul.mubr.f32.gmra.mrb[0].mxu0 %v615
  %v740 = vpop.f32.mrb[0].mxu0
  %v741 = vadd.f32 %v637, %v740
  %v742 = vpop.f32.mrb[0].mxu0
  %743 = vmatprep.mubr.f32.mxu0 0.0
  %744 = vmatmul.mubr.f32.gmra.mrb[0].mxu0 %v616
  %v745 = vpop.f32.mrb[0].mxu0
  %v746 = vadd.f32 %v637, %v745
  %v747 = vpop.f32.mrb[0].mxu0
  %748 = vmatprep.mubr.f32.mxu0 0.0
  %749 = vmatmul.mubr.f32.gmra.mrb[0].mxu0 %v617
  %v750 = vpop.f32.mrb[0].mxu0
  %v751 = vadd.f32 %v637, %v750
  %v752 = vpop.f32.mrb[0].mxu0
  %753 = vmatprep.mubr.f32.mxu0 0.0
  %754 = vmatmul.mubr.f32.gmra.mrb[0].mxu0 %v618
  %v755 = vpop.f32.mrb[0].mxu0
  %v756 = vadd.f32 %v637, %v755
  %v757 = vpop.f32.mrb[0].mxu0
  %758 = vmatprep.mubr.f32.mxu0 0.0
  %759 = vmatmul.mubr.f32.gmra.mrb[0].mxu0 %v619
  %v760 = vpop.f32.mrb[0].mxu0
  %v761 = vadd.f32 %v637, %v760
  %v762 = vpop.f32.mrb[0].mxu0
  %763 = vmatprep.mubr.f32.mxu0 0.0
  %764 = vmatmul.mubr.f32.gmra.mrb[0].mxu0 %v620
  %v765 = vpop.f32.mrb[0].mxu0
  %v766 = vadd.f32 %v637, %v765
  %v767 = vpop.f32.mrb[0].mxu0
  %768 = vmatprep.mubr.f32.mxu0 0.0
  %769 = vmatmul.mubr.f32.gmra.mrb[0].mxu0 %v621
  %v770 = vpop.f32.mrb[0].mxu0
  %v771 = vadd.f32 %v637, %v770
  %v772 = vpop.f32.mrb[0].mxu0
  %773 = vmatprep.mubr.f32.mxu0 0.0
  %774 = vmatmul.mubr.f32.gmra.mrb[0].mxu0 %v622
  %v775 = vpop.f32.mrb[0].mxu0
  %v776 = vadd.f32 %v637, %v775
  %v777 = vpop.f32.mrb[0].mxu0
  %778 = vmatprep.mubr.f32.mxu0 0.0
  %779 = vmatmul.mubr.f32.gmra.mrb[0].mxu0 %v623
  %v780 = vpop.f32.mrb[0].mxu0
  %v781 = vadd.f32 %v637, %v780
  %v782 = vpop.f32.mrb[0].mxu0
  %783 = vmatprep.mubr.f32.mxu0 0.0
  %784 = vmatmul.mubr.f32.gmra.mrb[0].mxu0 %v624
  %v785 = vpop.f32.mrb[0].mxu0
  %v786 = vadd.f32 %v637, %v785
  %v787 = vpop.f32.mrb[0].mxu0
  %788 = vmatprep.mubr.f32.mxu0 0.0
  %789 = vmatmul.mubr.f32.gmra.mrb[0].mxu0 %v625
  %v790 = vpop.f32.mrb[0].mxu0
  %v791 = vadd.f32 %v637, %v790
  %v792 = vpop.f32.mrb[0].mxu0
  %793 = vmatprep.mubr.f32.mxu0 0.0
  %794 = vmatmul.mubr.f32.gmra.mrb[0].mxu0 %v626
  %v795 = vpop.f32.mrb[0].mxu0
  %v796 = vadd.f32 %v637, %v795
  %v797 = vpop.f32.mrb[0].mxu0
  %798 = vmatprep.mubr.f32.mxu0 0.0
  %799 = vmatmul.mubr.f32.gmra.mrb[0].mxu0 %v627
  %v800 = vpop.f32.mrb[0].mxu0
  %v801 = vadd.f32 %v637, %v800
  %v802 = vpop.f32.mrb[0].mxu0
  %803 = vmatprep.mubr.f32.mxu0 0.0
  %804 = vmatmul.mubr.f32.gmra.mrb[0].mxu0 %v628
  %v805 = vpop.f32.mrb[0].mxu0
  %v806 = vadd.f32 %v637, %v805
  %v807 = vpop.f32.mrb[0].mxu0
  %808 = vmatprep.mubr.f32.mxu0 0.0
  %809 = vmatmul.mubr.f32.gmra.mrb[0].mxu0 %v629
  %v810 = vpop.f32.mrb[0].mxu0
  %v811 = vadd.f32 %v637, %v810
  %v812 = vpop.f32.mrb[0].mxu0
  %813 = vmatprep.mubr.f32.mxu0 0.0
  %814 = vmatmul.mubr.f32.gmra.mrb[0].mxu0 %v630
  %v815 = vpop.f32.mrb[0].mxu0
  %v816 = vadd.f32 %v637, %v815
  %v817 = vpop.f32.mrb[0].mxu0
  %818 = vmatprep.mubr.f32.mxu0 0.0
  %819 = vmatmul.mubr.f32.gmra.mrb[0].mxu0 %v631
  %v820 = vpop.f32.mrb[0].mxu0
  %v821 = vadd.f32 %v637, %v820
  %v822 = vpop.f32.mrb[0].mxu0
  %823 = vmatprep.mubr.f32.mxu0 0.0
  %824 = vmatmul.mubr.f32.gmra.mrb[0].mxu0 %v632
  %v825 = vpop.f32.mrb[0].mxu0
  %v826 = vadd.f32 %v637, %v825
  %v827 = vpop.f32.mrb[0].mxu0
  %828 = vdwg.mxu0
  %vm829 = vcmask 7168
  %v830 = vsel %vm829, %v706, -inf
  %v831 = vsel %vm829, %v711, -inf
  %v832 = vsel %vm829, %v716, -inf
  %v833 = vsel %vm829, %v721, -inf
  %v834 = vsel %vm829, %v726, -inf
  %v835 = vmax.f32 %v830, %v834
  %v836 = vsel %vm829, %v731, -inf
  %v837 = vmax.f32 %v831, %v836
  %v838 = vsel %vm829, %v736, -inf
  %v839 = vmax.f32 %v832, %v838
  %v840 = vsel %vm829, %v741, -inf
  %v841 = vmax.f32 %v833, %v840
  %v842 = vsel %vm829, %v746, -inf
  %v843 = vmax.f32 %v835, %v842
  %v844 = vsel %vm829, %v751, -inf
  %v845 = vmax.f32 %v837, %v844
  %v846 = vsel %vm829, %v756, -inf
  %v847 = vmax.f32 %v839, %v846
  %v848 = vsel %vm829, %v761, -inf
  %v849 = vmax.f32 %v841, %v848
  %v850 = vsel %vm829, %v766, -inf
  %v851 = vmax.f32 %v843, %v850
  %v852 = vsel %vm829, %v771, -inf
  %v853 = vmax.f32 %v845, %v852
  %v854 = vsel %vm829, %v776, -inf
  %v855 = vmax.f32 %v847, %v854
  %v856 = vsel %vm829, %v781, -inf
  %v857 = vmax.f32 %v849, %v856
  %v858 = vsel %vm829, %v786, -inf
  %v859 = vmax.f32 %v851, %v858
  %v860 = vsel %vm829, %v791, -inf
  %v861 = vmax.f32 %v853, %v860
  %v862 = vsel %vm829, %v796, -inf
  %v863 = vmax.f32 %v855, %v862
  %v864 = vsel %vm829, %v801, -inf
  %v865 = vmax.f32 %v857, %v864
  %v866 = vsel %vm829, %v806, -inf
  %v867 = vmax.f32 %v859, %v866
  %v868 = vsel %vm829, %v811, -inf
  %v869 = vmax.f32 %v861, %v868
  %v870 = vsel %vm829, %v816, -inf
  %v871 = vmax.f32 %v863, %v870
  %v872 = vsel %vm829, %v821, -inf
  %v873 = vmax.f32 %v865, %v872
  %v874 = vsel %vm829, %v826, -inf
  %v875 = vmax.f32 %v867, %v874
  %v876 = vmax.f32 %v875, %v869
  %v877 = vmax.f32 %v871, %v873
  %v878 = vmax.f32 %v876, %v877
  %v879 = vrot.slane %v878, 4
  %v880 = vmax.f32 %v878, %v879
  %v881 = vrot.slane %v880, 2
  %v882 = vmax.f32 %v880, %v881
  %v883 = vrot.slane %v882, 1
  %v884 = vmax.f32 %v882, %v883
  %v885 = vsel %vm829, %v706, inf
  %v886 = vsel %vm829, %v711, inf
  %v887 = vsel %vm829, %v716, inf
  %v888 = vsel %vm829, %v721, inf
  %v889 = vsel %vm829, %v726, inf
  %v890 = vmin.f32 %v885, %v889
  %v891 = vsel %vm829, %v731, inf
  %v892 = vmin.f32 %v886, %v891
  %v893 = vsel %vm829, %v736, inf
  %v894 = vmin.f32 %v887, %v893
  %v895 = vsel %vm829, %v741, inf
  %v896 = vmin.f32 %v888, %v895
  %v897 = vsel %vm829, %v746, inf
  %v898 = vmin.f32 %v890, %v897
  %v899 = vsel %vm829, %v751, inf
  %v900 = vmin.f32 %v892, %v899
  %v901 = vsel %vm829, %v756, inf
  %v902 = vmin.f32 %v894, %v901
  %v903 = vsel %vm829, %v761, inf
  %v904 = vmin.f32 %v896, %v903
  %v905 = vsel %vm829, %v766, inf
  %v906 = vmin.f32 %v898, %v905
  %v907 = vsel %vm829, %v771, inf
  %v908 = vmin.f32 %v900, %v907
  %v909 = vsel %vm829, %v776, inf
  %v910 = vmin.f32 %v902, %v909
  %v911 = vsel %vm829, %v781, inf
  %v912 = vmin.f32 %v904, %v911
  %v913 = vsel %vm829, %v786, inf
  %v914 = vmin.f32 %v906, %v913
  %v915 = vsel %vm829, %v791, inf
  %v916 = vmin.f32 %v908, %v915
  %v917 = vsel %vm829, %v796, inf
  %v918 = vmin.f32 %v910, %v917
  %v919 = vsel %vm829, %v801, inf
  %v920 = vmin.f32 %v912, %v919
  %v921 = vsel %vm829, %v806, inf
  %v922 = vmin.f32 %v914, %v921
  %v923 = vsel %vm829, %v811, inf
  %v924 = vmin.f32 %v916, %v923
  %v925 = vsel %vm829, %v816, inf
  %v926 = vmin.f32 %v918, %v925
  %v927 = vsel %vm829, %v821, inf
  %v928 = vmin.f32 %v920, %v927
  %v929 = vsel %vm829, %v826, inf
  %v930 = vmin.f32 %v922, %v929
  %v931 = vmin.f32 %v930, %v924
  %v932 = vmin.f32 %v926, %v928
  %v933 = vmin.f32 %v931, %v932
  %v934 = vrot.slane %v933, 4
  %v935 = vmin.f32 %v933, %v934
  %v936 = vrot.slane %v935, 2
  %v937 = vmin.f32 %v935, %v936
  %v938 = vrot.slane %v937, 1
  %v939 = vmin.f32 %v937, %v938
  %v940 = vmax.f32 %v884, 0.0
  %v941 = vmul.f32 %v940, %v110
  %v942 = vadd.f32 %v941, %v111
  %v943 = vmax.f32 %v939, 0.0
  %v944 = vmul.f32 %v943, %v110
  %v945 = vadd.f32 %v944, %v111
  %v946 = vmax.f32 %v942, %v945
  %v947 = vld [vmem:[%s8] sm:$0x1]
  %v948 = vmax.f32 %v947, %v946
  %vm949 = vcmask 0
  %950 = vst.msk [vmem:[%s8] sm:$0x1] %vm949, %v948
  %s951 = scalar_lea.vmem %s64, 200
  %v952 = vld [vmem:[%s951] sm:$0xff]
  %v953 = vld [vmem:[%s951 + $0x8] sm:$0xff]
  %v954 = vld [vmem:[%s951 + $0x10] sm:$0xff]
  %v955 = vld [vmem:[%s951 + $0x18] sm:$0xff]
  %v956 = vld [vmem:[%s951 + $0x20] sm:$0xff]
  %v957 = vld [vmem:[%s951 + $0x28] sm:$0xff]
  %v958 = vld [vmem:[%s951 + $0x30] sm:$0xff]
  %v959 = vld [vmem:[%s951 + $0x38] sm:$0xff]
  %v960 = vld [vmem:[%s951 + $0x40] sm:$0xff]
  %v961 = vld [vmem:[%s951 + $0x48] sm:$0xff]
  %v962 = vld [vmem:[%s951 + $0x50] sm:$0xff]
  %v963 = vld [vmem:[%s951 + $0x58] sm:$0xff]
  %v964 = vld [vmem:[%s951 + $0x60] sm:$0xff]
  %v965 = vld [vmem:[%s951 + $0x68] sm:$0xff]
  %v966 = vld [vmem:[%s951 + $0x70] sm:$0xff]
  %v967 = vld [vmem:[%s951 + $0x78] sm:$0xff]
  %v968 = vld [vmem:[%s951 + $0x80] sm:$0xff]
  %v969 = vld [vmem:[%s951 + $0x88] sm:$0xff]
  %v970 = vld [vmem:[%s951 + $0x90] sm:$0xff]
  %v971 = vld [vmem:[%s951 + $0x98] sm:$0xff]
  %v972 = vld [vmem:[%s951 + $0xa0] sm:$0xff]
  %v973 = vld [vmem:[%s951 + $0xa8] sm:$0xff]
  %v974 = vld [vmem:[%s951 + $0xb0] sm:$0xff]
  %v975 = vld [vmem:[%s951 + $0xb8] sm:$0xff]
  %v976 = vld [vmem:[%s951 + $0xc0] sm:$0xff]
  %v977 = vpack.c.bf16 %v953, %v952
  %v978 = vpack.c.bf16 %v955, %v954
  %v979 = vpack.c.bf16 %v957, %v956
  %v980 = vpack.c.bf16 %v959, %v958
  %v981 = vpack.c.bf16 %v961, %v960
  %v982 = vpack.c.bf16 %v963, %v962
  %v983 = vpack.c.bf16 %v965, %v964
  %v984 = vpack.c.bf16 %v967, %v966
  %v985 = vpack.c.bf16 %v969, %v968
  %v986 = vpack.c.bf16 %v971, %v970
  %v987 = vpack.c.bf16 %v973, %v972
  %v988 = vpack.c.bf16 %v975, %v974
  %v989 = vpack.c.bf16 %v976, %v976
  %s990 = scalar_lea.vmem %s72, 200
  %v991 = vld [vmem:[%s990] sm:$0xff]
  %v992 = vld [vmem:[%s990 + $0x8] sm:$0xff]
  %v993 = vld [vmem:[%s990 + $0x10] sm:$0xff]
  %v994 = vld [vmem:[%s990 + $0x18] sm:$0xff]
  %v995 = vld [vmem:[%s990 + $0x20] sm:$0xff]
  %v996 = vld [vmem:[%s990 + $0x28] sm:$0xff]
  %v997 = vld [vmem:[%s990 + $0x30] sm:$0xff]
  %v998 = vld [vmem:[%s990 + $0x38] sm:$0xff]
  %v999 = vld [vmem:[%s990 + $0x40] sm:$0xff]
  %v1000 = vld [vmem:[%s990 + $0x48] sm:$0xff]
  %v1001 = vld [vmem:[%s990 + $0x50] sm:$0xff]
  %v1002 = vld [vmem:[%s990 + $0x58] sm:$0xff]
  %v1003 = vld [vmem:[%s990 + $0x60] sm:$0xff]
  %v1004 = vld [vmem:[%s990 + $0x68] sm:$0xff]
  %v1005 = vld [vmem:[%s990 + $0x70] sm:$0xff]
  %v1006 = vld [vmem:[%s990 + $0x78] sm:$0xff]
  %v1007 = vld [vmem:[%s990 + $0x80] sm:$0xff]
  %v1008 = vld [vmem:[%s990 + $0x88] sm:$0xff]
  %v1009 = vld [vmem:[%s990 + $0x90] sm:$0xff]
  %v1010 = vld [vmem:[%s990 + $0x98] sm:$0xff]
  %v1011 = vld [vmem:[%s990 + $0xa0] sm:$0xff]
  %v1012 = vld [vmem:[%s990 + $0xa8] sm:$0xff]
  %v1013 = vld [vmem:[%s990 + $0xb0] sm:$0xff]
  %v1014 = vld [vmem:[%s990 + $0xb8] sm:$0xff]
  %v1015 = vld [vmem:[%s990 + $0xc0] sm:$0xff]
  %v1016 = vpack.c.bf16 %v992, %v991
  %v1017 = vpack.c.bf16 %v994, %v993
  %v1018 = vpack.c.bf16 %v996, %v995
  %v1019 = vpack.c.bf16 %v998, %v997
  %v1020 = vpack.c.bf16 %v1000, %v999
  %v1021 = vpack.c.bf16 %v1002, %v1001
  %v1022 = vpack.c.bf16 %v1004, %v1003
  %v1023 = vpack.c.bf16 %v1006, %v1005
  %v1024 = vpack.c.bf16 %v1008, %v1007
  %v1025 = vpack.c.bf16 %v1010, %v1009
  %v1026 = vpack.c.bf16 %v1012, %v1011
  %v1027 = vpack.c.bf16 %v1014, %v1013
  %v1028 = vpack.c.bf16 %v1015, %v1015
  %v1030 = vsel %vm188, %v1016, 0
  %v1033 = vsel %vm188, %v1017, 0
  %v1036 = vsel %vm188, %v1018, 0
  %v1039 = vsel %vm188, %v1019, 0
  %v1042 = vsel %vm188, %v1020, 0
  %v1045 = vsel %vm188, %v1021, 0
  %v1048 = vsel %vm188, %v1022, 0
  %v1051 = vsel %vm188, %v1023, 0
  %v1054 = vsel %vm188, %v1024, 0
  %v1057 = vsel %vm188, %v1025, 0
  %v1060 = vsel %vm188, %v1026, 0
  %v1063 = vsel %vm188, %v1027, 0
  %v1066 = vsel %vm188, %v1028, 0
  %1068 = vmatprep.subr.bf16.mxu0 0
  %1069 = vmatpush1.bf16.msra.mxu0 %v233
  %1070 = vmatprep.subr.bf16.mxu0 0
  %1071 = vmatpush1.bf16.msra.mxu0 0
  %1072 = vmatprep.subr.bf16.mxu0 0
  %1073 = vmatpush1.bf16.msra.mxu0 0
  %1074 = vmatprep.subr.bf16.mxu0 0
  %1075 = vmatpush1.bf16.msra.mxu0 0
  %1076 = vmatprep.subr.bf16.mxu0 0
  %1077 = vmatpush1.bf16.msra.mxu0 0
  %1078 = vmatprep.subr.bf16.mxu0 0
  %1079 = vmatpush1.bf16.msra.mxu0 0
  %1080 = vmatprep.subr.bf16.mxu0 0
  %1081 = vmatpush1.bf16.msra.mxu0 0
  %1082 = vmatprep.subr.bf16.mxu0 0
  %1083 = vmatpush1.bf16.msra.mxu0 0
  %1084 = vmatprep.subr.bf16.mxu0 0
  %1085 = vmatpush1.bf16.msra.mxu0 0
  %1086 = vmatprep.subr.bf16.mxu0 0
  %1087 = vmatpush1.bf16.msra.mxu0 0
  %1088 = vmatprep.subr.bf16.mxu0 0
  %1089 = vmatpush1.bf16.msra.mxu0 0
  %1090 = vmatprep.subr.bf16.mxu0 0
  %1091 = vmatpush1.bf16.msra.mxu0 0
  %1092 = vmatprep.subr.bf16.mxu0 0
  %1093 = vmatpush1.bf16.msra.mxu0 0
  %1094 = vmatprep.subr.bf16.mxu0 0
  %1095 = vmatpush1.bf16.msra.mxu0 0
  %1096 = vmatprep.subr.bf16.mxu0 0
  %1097 = vmatpush1.bf16.msra.mxu0 0
  %1098 = vmatprep.subr.bf16.mxu0 0
  %1099 = vmatpush1.bf16.msra.mxu0 0
  %1100 = vmatprep.mubr.bf16.mxu0 0
  %1101 = vmatmul.mubr.bf16.gmra.mrb[0].mxu0 %v1030
  %v1102 = vpop.f32.mrb[0].mxu0
  %v1103 = vadd.f32 0.0, %v1102
  %v1104 = vpop.f32.mrb[0].mxu0
  %v1105 = vpop.f32.mrb[0].mxu0
  %v1106 = vadd.f32 0.0, %v1105
  %v1107 = vpop.f32.mrb[0].mxu0
  %1108 = vmatprep.mubr.bf16.mxu0 0
  %1109 = vmatmul.mubr.bf16.gmra.mrb[0].mxu0 %v1033
  %v1110 = vpop.f32.mrb[0].mxu0
  %v1111 = vadd.f32 0.0, %v1110
  %v1112 = vpop.f32.mrb[0].mxu0
  %v1113 = vpop.f32.mrb[0].mxu0
  %v1114 = vadd.f32 0.0, %v1113
  %v1115 = vpop.f32.mrb[0].mxu0
  %1116 = vmatprep.mubr.bf16.mxu0 0
  %1117 = vmatmul.mubr.bf16.gmra.mrb[0].mxu0 %v1036
  %v1118 = vpop.f32.mrb[0].mxu0
  %v1119 = vadd.f32 0.0, %v1118
  %v1120 = vpop.f32.mrb[0].mxu0
  %v1121 = vpop.f32.mrb[0].mxu0
  %v1122 = vadd.f32 0.0, %v1121
  %v1123 = vpop.f32.mrb[0].mxu0
  %1124 = vmatprep.mubr.bf16.mxu0 0
  %1125 = vmatmul.mubr.bf16.gmra.mrb[0].mxu0 %v1039
  %v1126 = vpop.f32.mrb[0].mxu0
  %v1127 = vadd.f32 0.0, %v1126
  %v1128 = vpop.f32.mrb[0].mxu0
  %v1129 = vpop.f32.mrb[0].mxu0
  %v1130 = vadd.f32 0.0, %v1129
  %v1131 = vpop.f32.mrb[0].mxu0
  %1132 = vmatprep.mubr.bf16.mxu0 0
  %1133 = vmatmul.mubr.bf16.gmra.mrb[0].mxu0 %v1042
  %v1134 = vpop.f32.mrb[0].mxu0
  %v1135 = vadd.f32 0.0, %v1134
  %v1136 = vpop.f32.mrb[0].mxu0
  %v1137 = vpop.f32.mrb[0].mxu0
  %v1138 = vadd.f32 0.0, %v1137
  %v1139 = vpop.f32.mrb[0].mxu0
  %1140 = vmatprep.mubr.bf16.mxu0 0
  %1141 = vmatmul.mubr.bf16.gmra.mrb[0].mxu0 %v1045
  %v1142 = vpop.f32.mrb[0].mxu0
  %v1143 = vadd.f32 0.0, %v1142
  %v1144 = vpop.f32.mrb[0].mxu0
  %v1145 = vpop.f32.mrb[0].mxu0
  %v1146 = vadd.f32 0.0, %v1145
  %v1147 = vpop.f32.mrb[0].mxu0
  %1148 = vmatprep.mubr.bf16.mxu0 0
  %1149 = vmatmul.mubr.bf16.gmra.mrb[0].mxu0 %v1048
  %v1150 = vpop.f32.mrb[0].mxu0
  %v1151 = vadd.f32 0.0, %v1150
  %v1152 = vpop.f32.mrb[0].mxu0
  %v1153 = vpop.f32.mrb[0].mxu0
  %v1154 = vadd.f32 0.0, %v1153
  %v1155 = vpop.f32.mrb[0].mxu0
  %1156 = vmatprep.mubr.bf16.mxu0 0
  %1157 = vmatmul.mubr.bf16.gmra.mrb[0].mxu0 %v1051
  %v1158 = vpop.f32.mrb[0].mxu0
  %v1159 = vadd.f32 0.0, %v1158
  %v1160 = vpop.f32.mrb[0].mxu0
  %v1161 = vpop.f32.mrb[0].mxu0
  %v1162 = vadd.f32 0.0, %v1161
  %v1163 = vpop.f32.mrb[0].mxu0
  %1164 = vmatprep.mubr.bf16.mxu0 0
  %1165 = vmatmul.mubr.bf16.gmra.mrb[0].mxu0 %v1054
  %v1166 = vpop.f32.mrb[0].mxu0
  %v1167 = vadd.f32 0.0, %v1166
  %v1168 = vpop.f32.mrb[0].mxu0
  %v1169 = vpop.f32.mrb[0].mxu0
  %v1170 = vadd.f32 0.0, %v1169
  %v1171 = vpop.f32.mrb[0].mxu0
  %1172 = vmatprep.mubr.bf16.mxu0 0
  %1173 = vmatmul.mubr.bf16.gmra.mrb[0].mxu0 %v1057
  %v1174 = vpop.f32.mrb[0].mxu0
  %v1175 = vadd.f32 0.0, %v1174
  %v1176 = vpop.f32.mrb[0].mxu0
  %v1177 = vpop.f32.mrb[0].mxu0
  %v1178 = vadd.f32 0.0, %v1177
  %v1179 = vpop.f32.mrb[0].mxu0
  %1180 = vmatprep.mubr.bf16.mxu0 0
  %1181 = vmatmul.mubr.bf16.gmra.mrb[0].mxu0 %v1060
  %v1182 = vpop.f32.mrb[0].mxu0
  %v1183 = vadd.f32 0.0, %v1182
  %v1184 = vpop.f32.mrb[0].mxu0
  %v1185 = vpop.f32.mrb[0].mxu0
  %v1186 = vadd.f32 0.0, %v1185
  %v1187 = vpop.f32.mrb[0].mxu0
  %1188 = vmatprep.mubr.bf16.mxu0 0
  %1189 = vmatmul.mubr.bf16.gmra.mrb[0].mxu0 %v1063
  %v1190 = vpop.f32.mrb[0].mxu0
  %v1191 = vadd.f32 0.0, %v1190
  %v1192 = vpop.f32.mrb[0].mxu0
  %v1193 = vpop.f32.mrb[0].mxu0
  %v1194 = vadd.f32 0.0, %v1193
  %v1195 = vpop.f32.mrb[0].mxu0
  %1196 = vmatprep.mubr.bf16.mxu0 0
  %1197 = vmatmul.mubr.bf16.gmra.mrb[0].mxu0 %v1066
  %v1198 = vpop.f32.mrb[0].mxu0
  %v1199 = vadd.f32 0.0, %v1198
  %v1200 = vpop.f32.mrb[0].mxu0
  %v1201 = vpop.f32.mrb[0].mxu0
  %v1202 = vpop.f32.mrb[0].mxu0
  %1203 = vdwg.mxu0
  %v1205 = vsel %vm394, %v977, 0
  %v1208 = vsel %vm394, %v978, 0
  %v1211 = vsel %vm394, %v979, 0
  %v1214 = vsel %vm394, %v980, 0
  %v1217 = vsel %vm394, %v981, 0
  %v1220 = vsel %vm394, %v982, 0
  %v1223 = vsel %vm394, %v983, 0
  %v1226 = vsel %vm394, %v984, 0
  %v1229 = vsel %vm394, %v985, 0
  %v1232 = vsel %vm394, %v986, 0
  %v1235 = vsel %vm394, %v987, 0
  %v1238 = vsel %vm394, %v988, 0
  %v1241 = vsel %vm394, %v989, 0
  %1243 = vmatprep.subr.bf16.mxu0 0
  %1244 = vmatpush1.bf16.msra.mxu0 %v387
  %1245 = vmatprep.subr.bf16.mxu0 0
  %1246 = vmatpush1.bf16.msra.mxu0 %v388
  %1247 = vmatprep.subr.bf16.mxu0 0
  %1248 = vmatpush1.bf16.msra.mxu0 %v389
  %1249 = vmatprep.subr.bf16.mxu0 0
  %1250 = vmatpush1.bf16.msra.mxu0 %v439
  %1251 = vmatprep.subr.bf16.mxu0 0
  %1252 = vmatpush1.bf16.msra.mxu0 0
  %1253 = vmatprep.subr.bf16.mxu0 0
  %1254 = vmatpush1.bf16.msra.mxu0 0
  %1255 = vmatprep.subr.bf16.mxu0 0
  %1256 = vmatpush1.bf16.msra.mxu0 0
  %1257 = vmatprep.subr.bf16.mxu0 0
  %1258 = vmatpush1.bf16.msra.mxu0 0
  %1259 = vmatprep.subr.bf16.mxu0 0
  %1260 = vmatpush1.bf16.msra.mxu0 0
  %1261 = vmatprep.subr.bf16.mxu0 0
  %1262 = vmatpush1.bf16.msra.mxu0 0
  %1263 = vmatprep.subr.bf16.mxu0 0
  %1264 = vmatpush1.bf16.msra.mxu0 0
  %1265 = vmatprep.subr.bf16.mxu0 0
  %1266 = vmatpush1.bf16.msra.mxu0 0
  %1267 = vmatprep.subr.bf16.mxu0 0
  %1268 = vmatpush1.bf16.msra.mxu0 0
  %1269 = vmatprep.subr.bf16.mxu0 0
  %1270 = vmatpush1.bf16.msra.mxu0 0
  %1271 = vmatprep.subr.bf16.mxu0 0
  %1272 = vmatpush1.bf16.msra.mxu0 0
  %1273 = vmatprep.subr.bf16.mxu0 0
  %1274 = vmatpush1.bf16.msra.mxu0 0
  %1275 = vmatprep.mubr.bf16.mxu0 0
  %1276 = vmatmul.mubr.bf16.gmra.mrb[0].mxu0 %v1205
  %v1277 = vpop.f32.mrb[0].mxu0
  %v1278 = vadd.f32 %v1103, %v1277
  %v1279 = vpop.f32.mrb[0].mxu0
  %v1280 = vpop.f32.mrb[0].mxu0
  %v1281 = vadd.f32 %v1106, %v1280
  %v1282 = vpop.f32.mrb[0].mxu0
  %1283 = vmatprep.mubr.bf16.mxu0 0
  %1284 = vmatmul.mubr.bf16.gmra.mrb[0].mxu0 %v1208
  %v1285 = vpop.f32.mrb[0].mxu0
  %v1286 = vadd.f32 %v1111, %v1285
  %v1287 = vpop.f32.mrb[0].mxu0
  %v1288 = vpop.f32.mrb[0].mxu0
  %v1289 = vadd.f32 %v1114, %v1288
  %v1290 = vpop.f32.mrb[0].mxu0
  %1291 = vmatprep.mubr.bf16.mxu0 0
  %1292 = vmatmul.mubr.bf16.gmra.mrb[0].mxu0 %v1211
  %v1293 = vpop.f32.mrb[0].mxu0
  %v1294 = vadd.f32 %v1119, %v1293
  %v1295 = vpop.f32.mrb[0].mxu0
  %v1296 = vpop.f32.mrb[0].mxu0
  %v1297 = vadd.f32 %v1122, %v1296
  %v1298 = vpop.f32.mrb[0].mxu0
  %1299 = vmatprep.mubr.bf16.mxu0 0
  %1300 = vmatmul.mubr.bf16.gmra.mrb[0].mxu0 %v1214
  %v1301 = vpop.f32.mrb[0].mxu0
  %v1302 = vadd.f32 %v1127, %v1301
  %v1303 = vpop.f32.mrb[0].mxu0
  %v1304 = vpop.f32.mrb[0].mxu0
  %v1305 = vadd.f32 %v1130, %v1304
  %v1306 = vpop.f32.mrb[0].mxu0
  %1307 = vmatprep.mubr.bf16.mxu0 0
  %1308 = vmatmul.mubr.bf16.gmra.mrb[0].mxu0 %v1217
  %v1309 = vpop.f32.mrb[0].mxu0
  %v1310 = vadd.f32 %v1135, %v1309
  %v1311 = vpop.f32.mrb[0].mxu0
  %v1312 = vpop.f32.mrb[0].mxu0
  %v1313 = vadd.f32 %v1138, %v1312
  %v1314 = vpop.f32.mrb[0].mxu0
  %1315 = vmatprep.mubr.bf16.mxu0 0
  %1316 = vmatmul.mubr.bf16.gmra.mrb[0].mxu0 %v1220
  %v1317 = vpop.f32.mrb[0].mxu0
  %v1318 = vadd.f32 %v1143, %v1317
  %v1319 = vpop.f32.mrb[0].mxu0
  %v1320 = vpop.f32.mrb[0].mxu0
  %v1321 = vadd.f32 %v1146, %v1320
  %v1322 = vpop.f32.mrb[0].mxu0
  %1323 = vmatprep.mubr.bf16.mxu0 0
  %1324 = vmatmul.mubr.bf16.gmra.mrb[0].mxu0 %v1223
  %v1325 = vpop.f32.mrb[0].mxu0
  %v1326 = vadd.f32 %v1151, %v1325
  %v1327 = vpop.f32.mrb[0].mxu0
  %v1328 = vpop.f32.mrb[0].mxu0
  %v1329 = vadd.f32 %v1154, %v1328
  %v1330 = vpop.f32.mrb[0].mxu0
  %1331 = vmatprep.mubr.bf16.mxu0 0
  %1332 = vmatmul.mubr.bf16.gmra.mrb[0].mxu0 %v1226
  %v1333 = vpop.f32.mrb[0].mxu0
  %v1334 = vadd.f32 %v1159, %v1333
  %v1335 = vpop.f32.mrb[0].mxu0
  %v1336 = vpop.f32.mrb[0].mxu0
  %v1337 = vadd.f32 %v1162, %v1336
  %v1338 = vpop.f32.mrb[0].mxu0
  %1339 = vmatprep.mubr.bf16.mxu0 0
  %1340 = vmatmul.mubr.bf16.gmra.mrb[0].mxu0 %v1229
  %v1341 = vpop.f32.mrb[0].mxu0
  %v1342 = vadd.f32 %v1167, %v1341
  %v1343 = vpop.f32.mrb[0].mxu0
  %v1344 = vpop.f32.mrb[0].mxu0
  %v1345 = vadd.f32 %v1170, %v1344
  %v1346 = vpop.f32.mrb[0].mxu0
  %1347 = vmatprep.mubr.bf16.mxu0 0
  %1348 = vmatmul.mubr.bf16.gmra.mrb[0].mxu0 %v1232
  %v1349 = vpop.f32.mrb[0].mxu0
  %v1350 = vadd.f32 %v1175, %v1349
  %v1351 = vpop.f32.mrb[0].mxu0
  %v1352 = vpop.f32.mrb[0].mxu0
  %v1353 = vadd.f32 %v1178, %v1352
  %v1354 = vpop.f32.mrb[0].mxu0
  %1355 = vmatprep.mubr.bf16.mxu0 0
  %1356 = vmatmul.mubr.bf16.gmra.mrb[0].mxu0 %v1235
  %v1357 = vpop.f32.mrb[0].mxu0
  %v1358 = vadd.f32 %v1183, %v1357
  %v1359 = vpop.f32.mrb[0].mxu0
  %v1360 = vpop.f32.mrb[0].mxu0
  %v1361 = vadd.f32 %v1186, %v1360
  %v1362 = vpop.f32.mrb[0].mxu0
  %1363 = vmatprep.mubr.bf16.mxu0 0
  %1364 = vmatmul.mubr.bf16.gmra.mrb[0].mxu0 %v1238
  %v1365 = vpop.f32.mrb[0].mxu0
  %v1366 = vadd.f32 %v1191, %v1365
  %v1367 = vpop.f32.mrb[0].mxu0
  %v1368 = vpop.f32.mrb[0].mxu0
  %v1369 = vadd.f32 %v1194, %v1368
  %v1370 = vpop.f32.mrb[0].mxu0
  %1371 = vmatprep.mubr.bf16.mxu0 0
  %1372 = vmatmul.mubr.bf16.gmra.mrb[0].mxu0 %v1241
  %v1373 = vpop.f32.mrb[0].mxu0
  %v1374 = vadd.f32 %v1199, %v1373
  %v1375 = vpop.f32.mrb[0].mxu0
  %v1376 = vpop.f32.mrb[0].mxu0
  %v1377 = vpop.f32.mrb[0].mxu0
  %1378 = vdwg.mxu0
  %v1379 = vadd.f32 %v1278, %v581
  %v1380 = vadd.f32 %v1281, %v581
  %v1381 = vadd.f32 %v1286, %v581
  %v1382 = vadd.f32 %v1289, %v581
  %v1383 = vadd.f32 %v1294, %v581
  %v1384 = vadd.f32 %v1297, %v581
  %v1385 = vadd.f32 %v1302, %v581
  %v1386 = vadd.f32 %v1305, %v581
  %v1387 = vadd.f32 %v1310, %v581
  %v1388 = vadd.f32 %v1313, %v581
  %v1389 = vadd.f32 %v1318, %v581
  %v1390 = vadd.f32 %v1321, %v581
  %v1391 = vadd.f32 %v1326, %v581
  %v1392 = vadd.f32 %v1329, %v581
  %v1393 = vadd.f32 %v1334, %v581
  %v1394 = vadd.f32 %v1337, %v581
  %v1395 = vadd.f32 %v1342, %v581
  %v1396 = vadd.f32 %v1345, %v581
  %v1397 = vadd.f32 %v1350, %v581
  %v1398 = vadd.f32 %v1353, %v581
  %v1399 = vadd.f32 %v1358, %v581
  %v1400 = vadd.f32 %v1361, %v581
  %v1401 = vadd.f32 %v1366, %v581
  %v1402 = vadd.f32 %v1369, %v581
  %v1403 = vadd.f32 %v1374, %v581
  %v1404 = vmax.f32 %v1379, 0.0
  %v1405 = vmax.f32 %v1380, 0.0
  %v1406 = vmax.f32 %v1381, 0.0
  %v1407 = vmax.f32 %v1382, 0.0
  %v1408 = vmax.f32 %v1383, 0.0
  %v1409 = vmax.f32 %v1384, 0.0
  %v1410 = vmax.f32 %v1385, 0.0
  %v1411 = vmax.f32 %v1386, 0.0
  %v1412 = vmax.f32 %v1387, 0.0
  %v1413 = vmax.f32 %v1388, 0.0
  %v1414 = vmax.f32 %v1389, 0.0
  %v1415 = vmax.f32 %v1390, 0.0
  %v1416 = vmax.f32 %v1391, 0.0
  %v1417 = vmax.f32 %v1392, 0.0
  %v1418 = vmax.f32 %v1393, 0.0
  %v1419 = vmax.f32 %v1394, 0.0
  %v1420 = vmax.f32 %v1395, 0.0
  %v1421 = vmax.f32 %v1396, 0.0
  %v1422 = vmax.f32 %v1397, 0.0
  %v1423 = vmax.f32 %v1398, 0.0
  %v1424 = vmax.f32 %v1399, 0.0
  %v1425 = vmax.f32 %v1400, 0.0
  %v1426 = vmax.f32 %v1401, 0.0
  %v1427 = vmax.f32 %v1402, 0.0
  %v1428 = vmax.f32 %v1403, 0.0
  %1429 = vmatprep.subr.mxu0 0.0
  %1430 = vmatpush1.msra.mxu0 %v93
  %1431 = vmatprep.subr.mxu0 0.0
  %1432 = vmatpush1.msra.mxu0 %v94
  %1433 = vmatprep.subr.mxu0 0.0
  %1434 = vmatpush1.msra.mxu0 %v95
  %1435 = vmatprep.subr.mxu0 0.0
  %1436 = vmatpush1.msra.mxu0 %v96
  %1437 = vmatprep.subr.mxu0 0.0
  %1438 = vmatpush1.msra.mxu0 %v97
  %1439 = vmatprep.subr.mxu0 0.0
  %1440 = vmatpush1.msra.mxu0 %v98
  %1441 = vmatprep.subr.mxu0 0.0
  %1442 = vmatpush1.msra.mxu0 %v99
  %1443 = vmatprep.subr.mxu0 0.0
  %1444 = vmatpush1.msra.mxu0 %v100
  %1445 = vmatprep.subr.mxu0 0.0
  %1446 = vmatpush1.msra.mxu0 %v101
  %1447 = vmatprep.subr.mxu0 0.0
  %1448 = vmatpush1.msra.mxu0 %v102
  %1449 = vmatprep.subr.mxu0 0.0
  %1450 = vmatpush1.msra.mxu0 %v103
  %1451 = vmatprep.subr.mxu0 0.0
  %1452 = vmatpush1.msra.mxu0 %v104
  %1453 = vmatprep.subr.mxu0 0.0
  %1454 = vmatpush1.msra.mxu0 %v105
  %1455 = vmatprep.subr.mxu0 0.0
  %1456 = vmatpush1.msra.mxu0 %v106
  %1457 = vmatprep.subr.mxu0 0.0
  %1458 = vmatpush1.msra.mxu0 %v107
  %1459 = vmatprep.subr.mxu0 0.0
  %1460 = vmatpush1.msra.mxu0 %v108
  %1461 = vmatprep.subr.mxu0 0.0
  %1462 = vmatpush1.msra.mxu0 0.0
  %1463 = vmatprep.subr.mxu0 0.0
  %1464 = vmatpush1.msra.mxu0 0.0
  %1465 = vmatprep.subr.mxu0 0.0
  %1466 = vmatpush1.msra.mxu0 0.0
  %1467 = vmatprep.subr.mxu0 0.0
  %1468 = vmatpush1.msra.mxu0 0.0
  %1469 = vmatprep.subr.mxu0 0.0
  %1470 = vmatpush1.msra.mxu0 0.0
  %1471 = vmatprep.subr.mxu0 0.0
  %1472 = vmatpush1.msra.mxu0 0.0
  %1473 = vmatprep.subr.mxu0 0.0
  %1474 = vmatpush1.msra.mxu0 0.0
  %1475 = vmatprep.subr.mxu0 0.0
  %1476 = vmatpush1.msra.mxu0 0.0
  %1477 = vmatprep.subr.mxu0 0.0
  %1478 = vmatpush1.msra.mxu0 0.0
  %1479 = vmatprep.subr.mxu0 0.0
  %1480 = vmatpush1.msra.mxu0 0.0
  %1481 = vmatprep.subr.mxu0 0.0
  %1482 = vmatpush1.msra.mxu0 0.0
  %1483 = vmatprep.subr.mxu0 0.0
  %1484 = vmatpush1.msra.mxu0 0.0
  %1485 = vmatprep.subr.mxu0 0.0
  %1486 = vmatpush1.msra.mxu0 0.0
  %1487 = vmatprep.subr.mxu0 0.0
  %1488 = vmatpush1.msra.mxu0 0.0
  %1489 = vmatprep.subr.mxu0 0.0
  %1490 = vmatpush1.msra.mxu0 0.0
  %1491 = vmatprep.subr.mxu0 0.0
  %1492 = vmatpush1.msra.mxu0 0.0
  %1493 = vmatprep.mubr.f32.mxu0 0.0
  %1494 = vmatmul.mubr.f32.gmra.mrb[0].mxu0 %v1404
  %v1495 = vpop.f32.mrb[0].mxu0
  %v1496 = vadd.f32 %v637, %v1495
  %v1497 = vpop.f32.mrb[0].mxu0
  %1498 = vmatprep.mubr.f32.mxu0 0.0
  %1499 = vmatmul.mubr.f32.gmra.mrb[0].mxu0 %v1405
  %v1500 = vpop.f32.mrb[0].mxu0
  %v1501 = vadd.f32 %v637, %v1500
  %v1502 = vpop.f32.mrb[0].mxu0
  %1503 = vmatprep.mubr.f32.mxu0 0.0
  %1504 = vmatmul.mubr.f32.gmra.mrb[0].mxu0 %v1406
  %v1505 = vpop.f32.mrb[0].mxu0
  %v1506 = vadd.f32 %v637, %v1505
  %v1507 = vpop.f32.mrb[0].mxu0
  %1508 = vmatprep.mubr.f32.mxu0 0.0
  %1509 = vmatmul.mubr.f32.gmra.mrb[0].mxu0 %v1407
  %v1510 = vpop.f32.mrb[0].mxu0
  %v1511 = vadd.f32 %v637, %v1510
  %v1512 = vpop.f32.mrb[0].mxu0
  %1513 = vmatprep.mubr.f32.mxu0 0.0
  %1514 = vmatmul.mubr.f32.gmra.mrb[0].mxu0 %v1408
  %v1515 = vpop.f32.mrb[0].mxu0
  %v1516 = vadd.f32 %v637, %v1515
  %v1517 = vpop.f32.mrb[0].mxu0
  %1518 = vmatprep.mubr.f32.mxu0 0.0
  %1519 = vmatmul.mubr.f32.gmra.mrb[0].mxu0 %v1409
  %v1520 = vpop.f32.mrb[0].mxu0
  %v1521 = vadd.f32 %v637, %v1520
  %v1522 = vpop.f32.mrb[0].mxu0
  %1523 = vmatprep.mubr.f32.mxu0 0.0
  %1524 = vmatmul.mubr.f32.gmra.mrb[0].mxu0 %v1410
  %v1525 = vpop.f32.mrb[0].mxu0
  %v1526 = vadd.f32 %v637, %v1525
  %v1527 = vpop.f32.mrb[0].mxu0
  %1528 = vmatprep.mubr.f32.mxu0 0.0
  %1529 = vmatmul.mubr.f32.gmra.mrb[0].mxu0 %v1411
  %v1530 = vpop.f32.mrb[0].mxu0
  %v1531 = vadd.f32 %v637, %v1530
  %v1532 = vpop.f32.mrb[0].mxu0
  %1533 = vmatprep.mubr.f32.mxu0 0.0
  %1534 = vmatmul.mubr.f32.gmra.mrb[0].mxu0 %v1412
  %v1535 = vpop.f32.mrb[0].mxu0
  %v1536 = vadd.f32 %v637, %v1535
  %v1537 = vpop.f32.mrb[0].mxu0
  %1538 = vmatprep.mubr.f32.mxu0 0.0
  %1539 = vmatmul.mubr.f32.gmra.mrb[0].mxu0 %v1413
  %v1540 = vpop.f32.mrb[0].mxu0
  %v1541 = vadd.f32 %v637, %v1540
  %v1542 = vpop.f32.mrb[0].mxu0
  %1543 = vmatprep.mubr.f32.mxu0 0.0
  %1544 = vmatmul.mubr.f32.gmra.mrb[0].mxu0 %v1414
  %v1545 = vpop.f32.mrb[0].mxu0
  %v1546 = vadd.f32 %v637, %v1545
  %v1547 = vpop.f32.mrb[0].mxu0
  %1548 = vmatprep.mubr.f32.mxu0 0.0
  %1549 = vmatmul.mubr.f32.gmra.mrb[0].mxu0 %v1415
  %v1550 = vpop.f32.mrb[0].mxu0
  %v1551 = vadd.f32 %v637, %v1550
  %v1552 = vpop.f32.mrb[0].mxu0
  %1553 = vmatprep.mubr.f32.mxu0 0.0
  %1554 = vmatmul.mubr.f32.gmra.mrb[0].mxu0 %v1416
  %v1555 = vpop.f32.mrb[0].mxu0
  %v1556 = vadd.f32 %v637, %v1555
  %v1557 = vpop.f32.mrb[0].mxu0
  %1558 = vmatprep.mubr.f32.mxu0 0.0
  %1559 = vmatmul.mubr.f32.gmra.mrb[0].mxu0 %v1417
  %v1560 = vpop.f32.mrb[0].mxu0
  %v1561 = vadd.f32 %v637, %v1560
  %v1562 = vpop.f32.mrb[0].mxu0
  %1563 = vmatprep.mubr.f32.mxu0 0.0
  %1564 = vmatmul.mubr.f32.gmra.mrb[0].mxu0 %v1418
  %v1565 = vpop.f32.mrb[0].mxu0
  %v1566 = vadd.f32 %v637, %v1565
  %v1567 = vpop.f32.mrb[0].mxu0
  %1568 = vmatprep.mubr.f32.mxu0 0.0
  %1569 = vmatmul.mubr.f32.gmra.mrb[0].mxu0 %v1419
  %v1570 = vpop.f32.mrb[0].mxu0
  %v1571 = vadd.f32 %v637, %v1570
  %v1572 = vpop.f32.mrb[0].mxu0
  %1573 = vmatprep.mubr.f32.mxu0 0.0
  %1574 = vmatmul.mubr.f32.gmra.mrb[0].mxu0 %v1420
  %v1575 = vpop.f32.mrb[0].mxu0
  %v1576 = vadd.f32 %v637, %v1575
  %v1577 = vpop.f32.mrb[0].mxu0
  %1578 = vmatprep.mubr.f32.mxu0 0.0
  %1579 = vmatmul.mubr.f32.gmra.mrb[0].mxu0 %v1421
  %v1580 = vpop.f32.mrb[0].mxu0
  %v1581 = vadd.f32 %v637, %v1580
  %v1582 = vpop.f32.mrb[0].mxu0
  %1583 = vmatprep.mubr.f32.mxu0 0.0
  %1584 = vmatmul.mubr.f32.gmra.mrb[0].mxu0 %v1422
  %v1585 = vpop.f32.mrb[0].mxu0
  %v1586 = vadd.f32 %v637, %v1585
  %v1587 = vpop.f32.mrb[0].mxu0
  %1588 = vmatprep.mubr.f32.mxu0 0.0
  %1589 = vmatmul.mubr.f32.gmra.mrb[0].mxu0 %v1423
  %v1590 = vpop.f32.mrb[0].mxu0
  %v1591 = vadd.f32 %v637, %v1590
  %v1592 = vpop.f32.mrb[0].mxu0
  %1593 = vmatprep.mubr.f32.mxu0 0.0
  %1594 = vmatmul.mubr.f32.gmra.mrb[0].mxu0 %v1424
  %v1595 = vpop.f32.mrb[0].mxu0
  %v1596 = vadd.f32 %v637, %v1595
  %v1597 = vpop.f32.mrb[0].mxu0
  %1598 = vmatprep.mubr.f32.mxu0 0.0
  %1599 = vmatmul.mubr.f32.gmra.mrb[0].mxu0 %v1425
  %v1600 = vpop.f32.mrb[0].mxu0
  %v1601 = vadd.f32 %v637, %v1600
  %v1602 = vpop.f32.mrb[0].mxu0
  %1603 = vmatprep.mubr.f32.mxu0 0.0
  %1604 = vmatmul.mubr.f32.gmra.mrb[0].mxu0 %v1426
  %v1605 = vpop.f32.mrb[0].mxu0
  %v1606 = vadd.f32 %v637, %v1605
  %v1607 = vpop.f32.mrb[0].mxu0
  %1608 = vmatprep.mubr.f32.mxu0 0.0
  %1609 = vmatmul.mubr.f32.gmra.mrb[0].mxu0 %v1427
  %v1610 = vpop.f32.mrb[0].mxu0
  %v1611 = vadd.f32 %v637, %v1610
  %v1612 = vpop.f32.mrb[0].mxu0
  %1613 = vmatprep.mubr.f32.mxu0 0.0
  %1614 = vmatmul.mubr.f32.gmra.mrb[0].mxu0 %v1428
  %v1615 = vpop.f32.mrb[0].mxu0
  %v1616 = vadd.f32 %v637, %v1615
  %v1617 = vpop.f32.mrb[0].mxu0
  %1618 = vdwg.mxu0
  %v1619 = vsel %vm829, %v1496, -inf
  %v1620 = vsel %vm829, %v1501, -inf
  %v1621 = vsel %vm829, %v1506, -inf
  %v1622 = vsel %vm829, %v1511, -inf
  %v1623 = vsel %vm829, %v1516, -inf
  %v1624 = vmax.f32 %v1619, %v1623
  %v1625 = vsel %vm829, %v1521, -inf
  %v1626 = vmax.f32 %v1620, %v1625
  %v1627 = vsel %vm829, %v1526, -inf
  %v1628 = vmax.f32 %v1621, %v1627
  %v1629 = vsel %vm829, %v1531, -inf
  %v1630 = vmax.f32 %v1622, %v1629
  %v1631 = vsel %vm829, %v1536, -inf
  %v1632 = vmax.f32 %v1624, %v1631
  %v1633 = vsel %vm829, %v1541, -inf
  %v1634 = vmax.f32 %v1626, %v1633
  %v1635 = vsel %vm829, %v1546, -inf
  %v1636 = vmax.f32 %v1628, %v1635
  %v1637 = vsel %vm829, %v1551, -inf
  %v1638 = vmax.f32 %v1630, %v1637
  %v1639 = vsel %vm829, %v1556, -inf
  %v1640 = vmax.f32 %v1632, %v1639
  %v1641 = vsel %vm829, %v1561, -inf
  %v1642 = vmax.f32 %v1634, %v1641
  %v1643 = vsel %vm829, %v1566, -inf
  %v1644 = vmax.f32 %v1636, %v1643
  %v1645 = vsel %vm829, %v1571, -inf
  %v1646 = vmax.f32 %v1638, %v1645
  %v1647 = vsel %vm829, %v1576, -inf
  %v1648 = vmax.f32 %v1640, %v1647
  %v1649 = vsel %vm829, %v1581, -inf
  %v1650 = vmax.f32 %v1642, %v1649
  %v1651 = vsel %vm829, %v1586, -inf
  %v1652 = vmax.f32 %v1644, %v1651
  %v1653 = vsel %vm829, %v1591, -inf
  %v1654 = vmax.f32 %v1646, %v1653
  %v1655 = vsel %vm829, %v1596, -inf
  %v1656 = vmax.f32 %v1648, %v1655
  %v1657 = vsel %vm829, %v1601, -inf
  %v1658 = vmax.f32 %v1650, %v1657
  %v1659 = vsel %vm829, %v1606, -inf
  %v1660 = vmax.f32 %v1652, %v1659
  %v1661 = vsel %vm829, %v1611, -inf
  %v1662 = vmax.f32 %v1654, %v1661
  %v1663 = vsel %vm829, %v1616, -inf
  %v1664 = vmax.f32 %v1656, %v1663
  %v1665 = vmax.f32 %v1664, %v1658
  %v1666 = vmax.f32 %v1660, %v1662
  %v1667 = vmax.f32 %v1665, %v1666
  %v1668 = vrot.slane %v1667, 4
  %v1669 = vmax.f32 %v1667, %v1668
  %v1670 = vrot.slane %v1669, 2
  %v1671 = vmax.f32 %v1669, %v1670
  %v1672 = vrot.slane %v1671, 1
  %v1673 = vmax.f32 %v1671, %v1672
  %v1674 = vsel %vm829, %v1496, inf
  %v1675 = vsel %vm829, %v1501, inf
  %v1676 = vsel %vm829, %v1506, inf
  %v1677 = vsel %vm829, %v1511, inf
  %v1678 = vsel %vm829, %v1516, inf
  %v1679 = vmin.f32 %v1674, %v1678
  %v1680 = vsel %vm829, %v1521, inf
  %v1681 = vmin.f32 %v1675, %v1680
  %v1682 = vsel %vm829, %v1526, inf
  %v1683 = vmin.f32 %v1676, %v1682
  %v1684 = vsel %vm829, %v1531, inf
  %v1685 = vmin.f32 %v1677, %v1684
  %v1686 = vsel %vm829, %v1536, inf
  %v1687 = vmin.f32 %v1679, %v1686
  %v1688 = vsel %vm829, %v1541, inf
  %v1689 = vmin.f32 %v1681, %v1688
  %v1690 = vsel %vm829, %v1546, inf
  %v1691 = vmin.f32 %v1683, %v1690
  %v1692 = vsel %vm829, %v1551, inf
  %v1693 = vmin.f32 %v1685, %v1692
  %v1694 = vsel %vm829, %v1556, inf
  %v1695 = vmin.f32 %v1687, %v1694
  %v1696 = vsel %vm829, %v1561, inf
  %v1697 = vmin.f32 %v1689, %v1696
  %v1698 = vsel %vm829, %v1566, inf
  %v1699 = vmin.f32 %v1691, %v1698
  %v1700 = vsel %vm829, %v1571, inf
  %v1701 = vmin.f32 %v1693, %v1700
  %v1702 = vsel %vm829, %v1576, inf
  %v1703 = vmin.f32 %v1695, %v1702
  %v1704 = vsel %vm829, %v1581, inf
  %v1705 = vmin.f32 %v1697, %v1704
  %v1706 = vsel %vm829, %v1586, inf
  %v1707 = vmin.f32 %v1699, %v1706
  %v1708 = vsel %vm829, %v1591, inf
  %v1709 = vmin.f32 %v1701, %v1708
  %v1710 = vsel %vm829, %v1596, inf
  %v1711 = vmin.f32 %v1703, %v1710
  %v1712 = vsel %vm829, %v1601, inf
  %v1713 = vmin.f32 %v1705, %v1712
  %v1714 = vsel %vm829, %v1606, inf
  %v1715 = vmin.f32 %v1707, %v1714
  %v1716 = vsel %vm829, %v1611, inf
  %v1717 = vmin.f32 %v1709, %v1716
  %v1718 = vsel %vm829, %v1616, inf
  %v1719 = vmin.f32 %v1711, %v1718
  %v1720 = vmin.f32 %v1719, %v1713
  %v1721 = vmin.f32 %v1715, %v1717
  %v1722 = vmin.f32 %v1720, %v1721
  %v1723 = vrot.slane %v1722, 4
  %v1724 = vmin.f32 %v1722, %v1723
  %v1725 = vrot.slane %v1724, 2
  %v1726 = vmin.f32 %v1724, %v1725
  %v1727 = vrot.slane %v1726, 1
  %v1728 = vmin.f32 %v1726, %v1727
  %v1729 = vmax.f32 %v1673, 0.0
  %v1730 = vmul.f32 %v1729, %v110
  %v1731 = vadd.f32 %v1730, %v111
  %v1732 = vmax.f32 %v1728, 0.0
  %v1733 = vmul.f32 %v1732, %v110
  %v1734 = vadd.f32 %v1733, %v111
  %v1735 = vmax.f32 %v1731, %v1734
  %s1736 = scalar_lea.vmem %s8, 1
  %v1737 = vld [vmem:[%s1736] sm:$0x1]
  %v1738 = vmax.f32 %v1737, %v1735
  %1739 = vst.msk [vmem:[%s1736] sm:$0x1] %vm949, %v1738
  // Predicated region
  $region38: #{tpu_custom_call.1} parent=0 // pred_check
    _
  $region39: #{tpu_custom_call.1} parent=0 // pred_check_branch
    %1741 = sbr.rel (0) target = $region41
  $region40: #{tpu_custom_call.1} parent=0 // pred_region
    _
  $region41: #{tpu_custom_call.1} parent=0 // pred_fallthru
    _
  // Predicated region
  $region42: #{tpu_custom_call.1} parent=0 // pred_check
    _
  $region43: #{tpu_custom_call.1} parent=0 // pred_check_branch
    %1743 = sbr.rel (0) target = $region45
  $region44: #{tpu_custom_call.1} parent=0 // pred_region
    _
  $region45: #{tpu_custom_call.1} parent=0 // pred_fallthru
    _

</llo_original>
